<compile_context>
chip_gen: v7x
topology: tpu7x:2x2x1
jax: 0.10.0
libtpu: 0.0.40
codegen_flags: <defaults>
</compile_context>

<pallas_src>
import functools

import jax
import jax.numpy as jnp
from jax.experimental import pallas as pl
from jax.experimental.pallas import tpu as pltpu

K = 7          # conv kernel size
PAD = 3        # conv padding
BN_EPS = 1e-5


def _conv_stats_kernel(x_ref, w_ref, conv_ref, stats_ref, xpad_ref, *, C, H, W):
    """Depthwise 7x7 conv (no bias) + per-lane sum / sum-of-squares.

    x_ref    : (1, H, W*C)        unpadded input, folded (w, c) lane axis
    w_ref    : (49, W*C)          per-tap weights, tiled W times along lanes
    conv_ref : (1, H, W*C)        f32 conv output
    stats_ref: (1, 2, W*C)        row 0 = sum over H, row 1 = sum of squares
    xpad_ref : (H+6, (W+6)*C)     VMEM scratch for the zero-padded tile
    """
    WC = W * C
    Hp = H + 2 * PAD
    WpC = (W + 2 * PAD) * C

    # Build the zero-padded tile in VMEM (pad fused into the kernel). The halo
    # must be re-zeroed every step: with "parallel" semantics each core owns its
    # own scratch, so a program_id==0 init would miss the other core.
    xpad_ref[...] = jnp.zeros((Hp, WpC), jnp.float32)
    xpad_ref[pl.ds(PAD, H), pl.ds(PAD * C, WC)] = x_ref[0].astype(jnp.float32)
    xpad = xpad_ref[...]                                  # (Hp, WpC)

    w = w_ref[...].astype(jnp.float32)                    # (49, WC)

    # Hoist the 7 kw lane-shifts (XLU work) out of the kh loop: 49 -> 7.
    xs = [xpad[:, kw * C: kw * C + WC] for kw in range(K)]   # 7 x (Hp, WC)

    acc = jnp.zeros((H, WC), jnp.float32)
    for kh in range(K):
        for kw in range(K):
            # sublane-only slice of a pre-shifted copy, then a lane-dense VPU FMA
            acc = acc + xs[kw][kh:kh + H, :] * w[kh * K + kw, :]

    conv_ref[0] = acc
    # Single pass over acc for both BN statistics (var = E[x^2] - mean^2 later).
    s = jnp.sum(acc, axis=0, keepdims=True)               # (1, WC)
    sq = jnp.sum(acc * acc, axis=0, keepdims=True)        # (1, WC)
    stats_ref[0] = jnp.concatenate([s, sq], axis=0)       # (2, WC)


@jax.jit
def global_mixer(x_nchw, w_dw, b_conv, gamma, beta):
    """x_nchw: (B, C, H, W). w_dw: (C, 1, 7, 7) PyTorch-style depthwise weight.

    b_conv is accepted for interface parity with nn.Conv2d(..., bias=True) but
    intentionally unused: a per-channel constant added uniformly over (N, H, W)
    is exactly cancelled by training-mode BatchNorm mean subtraction.
    """
    del b_conv
    B, C, H, W = x_nchw.shape
    WC = W * C
    Hp, WpC = H + 2 * PAD, (W + 2 * PAD) * C

    # Fast path is lane-dense only when the folded lane axis is a multiple of 128.
    # TODO(synk): generalize via explicit lane padding + masked stats for other shapes.
    assert WC % 128 == 0, "folded lane axis W*C must be a multiple of 128"

    # ---- layout glue: NCHW -> folded channels-last (lane index = w*C + c) ----
    x_fold = jnp.transpose(x_nchw, (0, 2, 3, 1)).reshape(B, H, WC)

    # (C, 1, 7, 7) -> (49, C) -> tiled to (49, W*C): lane i uses channel i % C.
    w_taps = jnp.transpose(w_dw[:, 0, :, :], (1, 2, 0)).reshape(K * K, C)
    w_fold = jnp.tile(w_taps, (1, W))                              # (49, WC)

    # ---- fused conv + per-lane statistics, grid over batch ----
    conv_f32, stats = pl.pallas_call(
        functools.partial(_conv_stats_kernel, C=C, H=H, W=W),
        grid=(B,),
        in_specs=[
            pl.BlockSpec((1, H, WC), lambda b: (b, 0, 0)),
            pl.BlockSpec((K * K, WC), lambda b: (0, 0)),
        ],
        out_specs=(
            pl.BlockSpec((1, H, WC), lambda b: (b, 0, 0)),
            pl.BlockSpec((1, 2, WC), lambda b: (b, 0, 0)),
        ),
        out_shape=(
            jax.ShapeDtypeStruct((B, H, WC), jnp.float32),
            jax.ShapeDtypeStruct((B, 2, WC), jnp.float32),
        ),
        scratch_shapes=[pltpu.VMEM((Hp, WpC), jnp.float32)],
        compiler_params=pltpu.CompilerParams(
            dimension_semantics=("parallel",),      # one step per v7x TC
            vmem_limit_bytes=32 * 1024 * 1024,
        ),
    )(x_fold, w_fold)

    # ---- tiny O(C) cross-tile reduction + BN fold into per-channel affine ----
    n = float(B * H * W)
    sum_c = stats[:, 0, :].reshape(B, W, C).sum(axis=(0, 1))
    sq_c = stats[:, 1, :].reshape(B, W, C).sum(axis=(0, 1))
    mean = sum_c / n
    var = jnp.maximum(sq_c / n - mean * mean, 0.0)
    scale_c = gamma * jax.lax.rsqrt(var + BN_EPS)
    shift_c = beta - mean * scale_c
    scale_fold = jnp.tile(scale_c, (W,)).reshape(1, 1, WC)
    shift_fold = jnp.tile(shift_c, (W,)).reshape(1, 1, WC)

    # ---- elementwise epilogue in plain jnp: XLA fuses affine + ReLU + residual
    #      with the un-fold / NCHW transpose (no second custom call). ----
    y_fold = jnp.maximum(conv_f32 * scale_fold + shift_fold, 0.0) \
        + x_fold.astype(jnp.float32)
    y = jnp.transpose(y_fold.reshape(B, H, W, C), (0, 3, 1, 2))
    return y.astype(x_nchw.dtype)


def _reference(x_nchw, w_dw, b_conv, gamma, beta):
    """Pure-JAX reference matching PyTorch GlobalMixer.forward (training-mode BN)."""
    C = x_nchw.shape[1]
    conv = jax.lax.conv_general_dilated(
        x_nchw, w_dw, window_strides=(1, 1), padding=((PAD, PAD), (PAD, PAD)),
        dimension_numbers=("NCHW", "OIHW", "NCHW"), feature_group_count=C,
    ) + b_conv.reshape(1, C, 1, 1)
    mean = jnp.mean(conv, axis=(0, 2, 3), keepdims=True)
    var = jnp.mean((conv - mean) ** 2, axis=(0, 2, 3), keepdims=True)
    y = (conv - mean) * jax.lax.rsqrt(var + BN_EPS)
    y = y * gamma.reshape(1, C, 1, 1) + beta.reshape(1, C, 1, 1)
    y = jnp.maximum(y, 0.0)
    return y + x_nchw


if __name__ == "__main__":
    # W*C = 16*8 = 128 -> fully lane-dense folded layout for the test shape.
    B, C, H, W = 2, 8, 16, 16

    key = jax.random.PRNGKey(0)
    kx, kw, kb, kg, kbt = jax.random.split(key, 5)

    x = jax.random.normal(kx, (B, C, H, W), dtype=jnp.float32)
    # Deterministic synthetic parameters (shapes from nn.Conv2d(C, C, 7, 1, 3,
    # groups=C) and nn.BatchNorm2d(C)); not loaded from a checkpoint.
    w_dw = jax.random.normal(kw, (C, 1, K, K), dtype=jnp.float32) * 0.05
    b_conv = jax.random.normal(kb, (C,), dtype=jnp.float32) * 0.1
    gamma = 1.0 + 0.1 * jax.random.normal(kg, (C,), dtype=jnp.float32)
    beta = 0.1 * jax.random.normal(kbt, (C,), dtype=jnp.float32)

    out = global_mixer(x, w_dw, b_conv, gamma, beta)
    out = jax.block_until_ready(out)

    ref = _reference(x, w_dw, b_conv, gamma, beta)
    assert out.shape == (B, C, H, W)
    assert jnp.allclose(out, ref, atol=1e-3, rtol=1e-3), "mismatch vs reference"

    print("KERNEL_OK")
</pallas_src>

<mosaic_0001>
module attributes {stable_mosaic.version = 11 : i64} {
  func.func @_conv_stats_kernel(%arg0: i32, %arg1: memref<1x16x128xf32, #tpu.memory_space<vmem>>, %arg2: memref<49x128xf32, #tpu.memory_space<vmem>>, %arg3: memref<1x16x128xf32, #tpu.memory_space<vmem>>, %arg4: memref<1x2x128xf32, #tpu.memory_space<vmem>>, %arg5: memref<22x176xf32, #tpu.memory_space<vmem>>) attributes {dimension_semantics = [#tpu.dimension_semantics<parallel>], iteration_bounds = array<i64: 2>, scalar_prefetch = 0 : i64, scratch_operands = 1 : i64, tpu.core_type = #tpu.core_type<tc>, window_params = [{transform_indices = @transform_0, window_bounds = array<i64: 1, 16, 128>}, {pipeline_mode = #tpu.pipeline_mode<synchronous>, transform_indices = @transform_1, window_bounds = array<i64: 49, 128>}, {transform_indices = @transform_2, window_bounds = array<i64: 1, 16, 128>}, {transform_indices = @transform_3, window_bounds = array<i64: 1, 2, 128>}]} {
    %cst = arith.constant 0.000000e+00 : f32
    %0 = vector.broadcast %cst : f32 to vector<22x176xf32>
    %c0 = arith.constant 0 : index
    %c0_0 = arith.constant 0 : index
    %1 = vector.load %arg5[%c0, %c0_0] : memref<22x176xf32, #tpu.memory_space<vmem>>, vector<22x176xf32>
    tpu.vector_store %arg5[%c0, %c0_0], %0 {strides = array<i32>} : memref<22x176xf32, #tpu.memory_space<vmem>>, vector<22x176xf32>,
    %c0_1 = arith.constant 0 : index
    %c0_2 = arith.constant 0 : index
    %c0_3 = arith.constant 0 : index
    %2 = vector.load %arg1[%c0_1, %c0_2, %c0_3] : memref<1x16x128xf32, #tpu.memory_space<vmem>>, vector<1x16x128xf32>
    %3 = vector.shape_cast %2 : vector<1x16x128xf32> to vector<16x128xf32>
    %c3 = arith.constant 3 : index
    %c24 = arith.constant 24 : index
    %4 = vector.load %arg5[%c3, %c24] : memref<22x176xf32, #tpu.memory_space<vmem>>, vector<16x128xf32>
    tpu.vector_store %arg5[%c3, %c24], %3 {strides = array<i32>} : memref<22x176xf32, #tpu.memory_space<vmem>>, vector<16x128xf32>,
    %c0_4 = arith.constant 0 : index
    %c0_5 = arith.constant 0 : index
    %5 = vector.load %arg5[%c0_4, %c0_5] : memref<22x176xf32, #tpu.memory_space<vmem>>, vector<22x176xf32>
    %c0_6 = arith.constant 0 : index
    %c0_7 = arith.constant 0 : index
    %6 = vector.load %arg2[%c0_6, %c0_7] : memref<49x128xf32, #tpu.memory_space<vmem>>, vector<49x128xf32>
    %7 = vector.extract_strided_slice %5 {offsets = [0, 0], sizes = [22, 128], strides = [1, 1]} : vector<22x176xf32> to vector<22x128xf32>
    %8 = vector.extract_strided_slice %5 {offsets = [0, 8], sizes = [22, 128], strides = [1, 1]} : vector<22x176xf32> to vector<22x128xf32>
    %9 = vector.extract_strided_slice %5 {offsets = [0, 16], sizes = [22, 128], strides = [1, 1]} : vector<22x176xf32> to vector<22x128xf32>
    %10 = vector.extract_strided_slice %5 {offsets = [0, 24], sizes = [22, 128], strides = [1, 1]} : vector<22x176xf32> to vector<22x128xf32>
    %11 = vector.extract_strided_slice %5 {offsets = [0, 32], sizes = [22, 128], strides = [1, 1]} : vector<22x176xf32> to vector<22x128xf32>
    %12 = vector.extract_strided_slice %5 {offsets = [0, 40], sizes = [22, 128], strides = [1, 1]} : vector<22x176xf32> to vector<22x128xf32>
    %13 = vector.extract_strided_slice %5 {offsets = [0, 48], sizes = [22, 128], strides = [1, 1]} : vector<22x176xf32> to vector<22x128xf32>
    %cst_8 = arith.constant 0.000000e+00 : f32
    %14 = vector.broadcast %cst_8 : f32 to vector<16x128xf32>
    %15 = vector.extract_strided_slice %7 {offsets = [0, 0], sizes = [16, 128], strides = [1, 1]} : vector<22x128xf32> to vector<16x128xf32>
    %16 = vector.extract_strided_slice %6 {offsets = [0, 0], sizes = [1, 128], strides = [1, 1]} : vector<49x128xf32> to vector<1x128xf32>
    %17 = vector.shape_cast %16 : vector<1x128xf32> to vector<128xf32>
    %18 = vector.shape_cast %17 : vector<128xf32> to vector<1x128xf32>
    %19 = vector.broadcast %18 : vector<1x128xf32> to vector<16x128xf32>
    %20 = arith.mulf %15, %19 : vector<16x128xf32>
    %21 = arith.addf %14, %20 : vector<16x128xf32>
    %22 = vector.extract_strided_slice %8 {offsets = [0, 0], sizes = [16, 128], strides = [1, 1]} : vector<22x128xf32> to vector<16x128xf32>
    %23 = vector.extract_strided_slice %6 {offsets = [1, 0], sizes = [1, 128], strides = [1, 1]} : vector<49x128xf32> to vector<1x128xf32>
    %24 = vector.shape_cast %23 : vector<1x128xf32> to vector<128xf32>
    %25 = vector.shape_cast %24 : vector<128xf32> to vector<1x128xf32>
    %26 = vector.broadcast %25 : vector<1x128xf32> to vector<16x128xf32>
    %27 = arith.mulf %22, %26 : vector<16x128xf32>
    %28 = arith.addf %21, %27 : vector<16x128xf32>
    %29 = vector.extract_strided_slice %9 {offsets = [0, 0], sizes = [16, 128], strides = [1, 1]} : vector<22x128xf32> to vector<16x128xf32>
    %30 = vector.extract_strided_slice %6 {offsets = [2, 0], sizes = [1, 128], strides = [1, 1]} : vector<49x128xf32> to vector<1x128xf32>
    %31 = vector.shape_cast %30 : vector<1x128xf32> to vector<128xf32>
    %32 = vector.shape_cast %31 : vector<128xf32> to vector<1x128xf32>
    %33 = vector.broadcast %32 : vector<1x128xf32> to vector<16x128xf32>
    %34 = arith.mulf %29, %33 : vector<16x128xf32>
    %35 = arith.addf %28, %34 : vector<16x128xf32>
    %36 = vector.extract_strided_slice %10 {offsets = [0, 0], sizes = [16, 128], strides = [1, 1]} : vector<22x128xf32> to vector<16x128xf32>
    %37 = vector.extract_strided_slice %6 {offsets = [3, 0], sizes = [1, 128], strides = [1, 1]} : vector<49x128xf32> to vector<1x128xf32>
    %38 = vector.shape_cast %37 : vector<1x128xf32> to vector<128xf32>
    %39 = vector.shape_cast %38 : vector<128xf32> to vector<1x128xf32>
    %40 = vector.broadcast %39 : vector<1x128xf32> to vector<16x128xf32>
    %41 = arith.mulf %36, %40 : vector<16x128xf32>
    %42 = arith.addf %35, %41 : vector<16x128xf32>
    %43 = vector.extract_strided_slice %11 {offsets = [0, 0], sizes = [16, 128], strides = [1, 1]} : vector<22x128xf32> to vector<16x128xf32>
    %44 = vector.extract_strided_slice %6 {offsets = [4, 0], sizes = [1, 128], strides = [1, 1]} : vector<49x128xf32> to vector<1x128xf32>
    %45 = vector.shape_cast %44 : vector<1x128xf32> to vector<128xf32>
    %46 = vector.shape_cast %45 : vector<128xf32> to vector<1x128xf32>
    %47 = vector.broadcast %46 : vector<1x128xf32> to vector<16x128xf32>
    %48 = arith.mulf %43, %47 : vector<16x128xf32>
    %49 = arith.addf %42, %48 : vector<16x128xf32>
    %50 = vector.extract_strided_slice %12 {offsets = [0, 0], sizes = [16, 128], strides = [1, 1]} : vector<22x128xf32> to vector<16x128xf32>
    %51 = vector.extract_strided_slice %6 {offsets = [5, 0], sizes = [1, 128], strides = [1, 1]} : vector<49x128xf32> to vector<1x128xf32>
    %52 = vector.shape_cast %51 : vector<1x128xf32> to vector<128xf32>
    %53 = vector.shape_cast %52 : vector<128xf32> to vector<1x128xf32>
    %54 = vector.broadcast %53 : vector<1x128xf32> to vector<16x128xf32>
    %55 = arith.mulf %50, %54 : vector<16x128xf32>
    %56 = arith.addf %49, %55 : vector<16x128xf32>
    %57 = vector.extract_strided_slice %13 {offsets = [0, 0], sizes = [16, 128], strides = [1, 1]} : vector<22x128xf32> to vector<16x128xf32>
    %58 = vector.extract_strided_slice %6 {offsets = [6, 0], sizes = [1, 128], strides = [1, 1]} : vector<49x128xf32> to vector<1x128xf32>
    %59 = vector.shape_cast %58 : vector<1x128xf32> to vector<128xf32>
    %60 = vector.shape_cast %59 : vector<128xf32> to vector<1x128xf32>
    %61 = vector.broadcast %60 : vector<1x128xf32> to vector<16x128xf32>
    %62 = arith.mulf %57, %61 : vector<16x128xf32>
    %63 = arith.addf %56, %62 : vector<16x128xf32>
    %64 = vector.extract_strided_slice %7 {offsets = [1, 0], sizes = [16, 128], strides = [1, 1]} : vector<22x128xf32> to vector<16x128xf32>
    %65 = vector.extract_strided_slice %6 {offsets = [7, 0], sizes = [1, 128], strides = [1, 1]} : vector<49x128xf32> to vector<1x128xf32>
    %66 = vector.shape_cast %65 : vector<1x128xf32> to vector<128xf32>
    %67 = vector.shape_cast %66 : vector<128xf32> to vector<1x128xf32>
    %68 = vector.broadcast %67 : vector<1x128xf32> to vector<16x128xf32>
    %69 = arith.mulf %64, %68 : vector<16x128xf32>
    %70 = arith.addf %63, %69 : vector<16x128xf32>
    %71 = vector.extract_strided_slice %8 {offsets = [1, 0], sizes = [16, 128], strides = [1, 1]} : vector<22x128xf32> to vector<16x128xf32>
    %72 = vector.extract_strided_slice %6 {offsets = [8, 0], sizes = [1, 128], strides = [1, 1]} : vector<49x128xf32> to vector<1x128xf32>
    %73 = vector.shape_cast %72 : vector<1x128xf32> to vector<128xf32>
    %74 = vector.shape_cast %73 : vector<128xf32> to vector<1x128xf32>
    %75 = vector.broadcast %74 : vector<1x128xf32> to vector<16x128xf32>
    %76 = arith.mulf %71, %75 : vector<16x128xf32>
    %77 = arith.addf %70, %76 : vector<16x128xf32>
    %78 = vector.extract_strided_slice %9 {offsets = [1, 0], sizes = [16, 128], strides = [1, 1]} : vector<22x128xf32> to vector<16x128xf32>
    %79 = vector.extract_strided_slice %6 {offsets = [9, 0], sizes = [1, 128], strides = [1, 1]} : vector<49x128xf32> to vector<1x128xf32>
    %80 = vector.shape_cast %79 : vector<1x128xf32> to vector<128xf32>
    %81 = vector.shape_cast %80 : vector<128xf32> to vector<1x128xf32>
    %82 = vector.broadcast %81 : vector<1x128xf32> to vector<16x128xf32>
    %83 = arith.mulf %78, %82 : vector<16x128xf32>
    %84 = arith.addf %77, %83 : vector<16x128xf32>
    %85 = vector.extract_strided_slice %10 {offsets = [1, 0], sizes = [16, 128], strides = [1, 1]} : vector<22x128xf32> to vector<16x128xf32>
    %86 = vector.extract_strided_slice %6 {offsets = [10, 0], sizes = [1, 128], strides = [1, 1]} : vector<49x128xf32> to vector<1x128xf32>
    %87 = vector.shape_cast %86 : vector<1x128xf32> to vector<128xf32>
    %88 = vector.shape_cast %87 : vector<128xf32> to vector<1x128xf32>
    %89 = vector.broadcast %88 : vector<1x128xf32> to vector<16x128xf32>
    %90 = arith.mulf %85, %89 : vector<16x128xf32>
    %91 = arith.addf %84, %90 : vector<16x128xf32>
    %92 = vector.extract_strided_slice %11 {offsets = [1, 0], sizes = [16, 128], strides = [1, 1]} : vector<22x128xf32> to vector<16x128xf32>
    %93 = vector.extract_strided_slice %6 {offsets = [11, 0], sizes = [1, 128], strides = [1, 1]} : vector<49x128xf32> to vector<1x128xf32>
    %94 = vector.shape_cast %93 : vector<1x128xf32> to vector<128xf32>
    %95 = vector.shape_cast %94 : vector<128xf32> to vector<1x128xf32>
    %96 = vector.broadcast %95 : vector<1x128xf32> to vector<16x128xf32>
    %97 = arith.mulf %92, %96 : vector<16x128xf32>
    %98 = arith.addf %91, %97 : vector<16x128xf32>
    %99 = vector.extract_strided_slice %12 {offsets = [1, 0], sizes = [16, 128], strides = [1, 1]} : vector<22x128xf32> to vector<16x128xf32>
    %100 = vector.extract_strided_slice %6 {offsets = [12, 0], sizes = [1, 128], strides = [1, 1]} : vector<49x128xf32> to vector<1x128xf32>
    %101 = vector.shape_cast %100 : vector<1x128xf32> to vector<128xf32>
    %102 = vector.shape_cast %101 : vector<128xf32> to vector<1x128xf32>
    %103 = vector.broadcast %102 : vector<1x128xf32> to vector<16x128xf32>
    %104 = arith.mulf %99, %103 : vector<16x128xf32>
    %105 = arith.addf %98, %104 : vector<16x128xf32>
    %106 = vector.extract_strided_slice %13 {offsets = [1, 0], sizes = [16, 128], strides = [1, 1]} : vector<22x128xf32> to vector<16x128xf32>
    %107 = vector.extract_strided_slice %6 {offsets = [13, 0], sizes = [1, 128], strides = [1, 1]} : vector<49x128xf32> to vector<1x128xf32>
    %108 = vector.shape_cast %107 : vector<1x128xf32> to vector<128xf32>
    %109 = vector.shape_cast %108 : vector<128xf32> to vector<1x128xf32>
    %110 = vector.broadcast %109 : vector<1x128xf32> to vector<16x128xf32>
    %111 = arith.mulf %106, %110 : vector<16x128xf32>
    %112 = arith.addf %105, %111 : vector<16x128xf32>
    %113 = vector.extract_strided_slice %7 {offsets = [2, 0], sizes = [16, 128], strides = [1, 1]} : vector<22x128xf32> to vector<16x128xf32>
    %114 = vector.extract_strided_slice %6 {offsets = [14, 0], sizes = [1, 128], strides = [1, 1]} : vector<49x128xf32> to vector<1x128xf32>
    %115 = vector.shape_cast %114 : vector<1x128xf32> to vector<128xf32>
    %116 = vector.shape_cast %115 : vector<128xf32> to vector<1x128xf32>
    %117 = vector.broadcast %116 : vector<1x128xf32> to vector<16x128xf32>
    %118 = arith.mulf %113, %117 : vector<16x128xf32>
    %119 = arith.addf %112, %118 : vector<16x128xf32>
    %120 = vector.extract_strided_slice %8 {offsets = [2, 0], sizes = [16, 128], strides = [1, 1]} : vector<22x128xf32> to vector<16x128xf32>
    %121 = vector.extract_strided_slice %6 {offsets = [15, 0], sizes = [1, 128], strides = [1, 1]} : vector<49x128xf32> to vector<1x128xf32>
    %122 = vector.shape_cast %121 : vector<1x128xf32> to vector<128xf32>
    %123 = vector.shape_cast %122 : vector<128xf32> to vector<1x128xf32>
    %124 = vector.broadcast %123 : vector<1x128xf32> to vector<16x128xf32>
    %125 = arith.mulf %120, %124 : vector<16x128xf32>
    %126 = arith.addf %119, %125 : vector<16x128xf32>
    %127 = vector.extract_strided_slice %9 {offsets = [2, 0], sizes = [16, 128], strides = [1, 1]} : vector<22x128xf32> to vector<16x128xf32>
    %128 = vector.extract_strided_slice %6 {offsets = [16, 0], sizes = [1, 128], strides = [1, 1]} : vector<49x128xf32> to vector<1x128xf32>
    %129 = vector.shape_cast %128 : vector<1x128xf32> to vector<128xf32>
    %130 = vector.shape_cast %129 : vector<128xf32> to vector<1x128xf32>
    %131 = vector.broadcast %130 : vector<1x128xf32> to vector<16x128xf32>
    %132 = arith.mulf %127, %131 : vector<16x128xf32>
    %133 = arith.addf %126, %132 : vector<16x128xf32>
    %134 = vector.extract_strided_slice %10 {offsets = [2, 0], sizes = [16, 128], strides = [1, 1]} : vector<22x128xf32> to vector<16x128xf32>
    %135 = vector.extract_strided_slice %6 {offsets = [17, 0], sizes = [1, 128], strides = [1, 1]} : vector<49x128xf32> to vector<1x128xf32>
    %136 = vector.shape_cast %135 : vector<1x128xf32> to vector<128xf32>
    %137 = vector.shape_cast %136 : vector<128xf32> to vector<1x128xf32>
    %138 = vector.broadcast %137 : vector<1x128xf32> to vector<16x128xf32>
    %139 = arith.mulf %134, %138 : vector<16x128xf32>
    %140 = arith.addf %133, %139 : vector<16x128xf32>
    %141 = vector.extract_strided_slice %11 {offsets = [2, 0], sizes = [16, 128], strides = [1, 1]} : vector<22x128xf32> to vector<16x128xf32>
    %142 = vector.extract_strided_slice %6 {offsets = [18, 0], sizes = [1, 128], strides = [1, 1]} : vector<49x128xf32> to vector<1x128xf32>
    %143 = vector.shape_cast %142 : vector<1x128xf32> to vector<128xf32>
    %144 = vector.shape_cast %143 : vector<128xf32> to vector<1x128xf32>
    %145 = vector.broadcast %144 : vector<1x128xf32> to vector<16x128xf32>
    %146 = arith.mulf %141, %145 : vector<16x128xf32>
    %147 = arith.addf %140, %146 : vector<16x128xf32>
    %148 = vector.extract_strided_slice %12 {offsets = [2, 0], sizes = [16, 128], strides = [1, 1]} : vector<22x128xf32> to vector<16x128xf32>
    %149 = vector.extract_strided_slice %6 {offsets = [19, 0], sizes = [1, 128], strides = [1, 1]} : vector<49x128xf32> to vector<1x128xf32>
    %150 = vector.shape_cast %149 : vector<1x128xf32> to vector<128xf32>
    %151 = vector.shape_cast %150 : vector<128xf32> to vector<1x128xf32>
    %152 = vector.broadcast %151 : vector<1x128xf32> to vector<16x128xf32>
    %153 = arith.mulf %148, %152 : vector<16x128xf32>
    %154 = arith.addf %147, %153 : vector<16x128xf32>
    %155 = vector.extract_strided_slice %13 {offsets = [2, 0], sizes = [16, 128], strides = [1, 1]} : vector<22x128xf32> to vector<16x128xf32>
    %156 = vector.extract_strided_slice %6 {offsets = [20, 0], sizes = [1, 128], strides = [1, 1]} : vector<49x128xf32> to vector<1x128xf32>
    %157 = vector.shape_cast %156 : vector<1x128xf32> to vector<128xf32>
    %158 = vector.shape_cast %157 : vector<128xf32> to vector<1x128xf32>
    %159 = vector.broadcast %158 : vector<1x128xf32> to vector<16x128xf32>
    %160 = arith.mulf %155, %159 : vector<16x128xf32>
    %161 = arith.addf %154, %160 : vector<16x128xf32>
    %162 = vector.extract_strided_slice %7 {offsets = [3, 0], sizes = [16, 128], strides = [1, 1]} : vector<22x128xf32> to vector<16x128xf32>
    %163 = vector.extract_strided_slice %6 {offsets = [21, 0], sizes = [1, 128], strides = [1, 1]} : vector<49x128xf32> to vector<1x128xf32>
    %164 = vector.shape_cast %163 : vector<1x128xf32> to vector<128xf32>
    %165 = vector.shape_cast %164 : vector<128xf32> to vector<1x128xf32>
    %166 = vector.broadcast %165 : vector<1x128xf32> to vector<16x128xf32>
    %167 = arith.mulf %162, %166 : vector<16x128xf32>
    %168 = arith.addf %161, %167 : vector<16x128xf32>
    %169 = vector.extract_strided_slice %8 {offsets = [3, 0], sizes = [16, 128], strides = [1, 1]} : vector<22x128xf32> to vector<16x128xf32>
    %170 = vector.extract_strided_slice %6 {offsets = [22, 0], sizes = [1, 128], strides = [1, 1]} : vector<49x128xf32> to vector<1x128xf32>
    %171 = vector.shape_cast %170 : vector<1x128xf32> to vector<128xf32>
    %172 = vector.shape_cast %171 : vector<128xf32> to vector<1x128xf32>
    %173 = vector.broadcast %172 : vector<1x128xf32> to vector<16x128xf32>
    %174 = arith.mulf %169, %173 : vector<16x128xf32>
    %175 = arith.addf %168, %174 : vector<16x128xf32>
    %176 = vector.extract_strided_slice %9 {offsets = [3, 0], sizes = [16, 128], strides = [1, 1]} : vector<22x128xf32> to vector<16x128xf32>
    %177 = vector.extract_strided_slice %6 {offsets = [23, 0], sizes = [1, 128], strides = [1, 1]} : vector<49x128xf32> to vector<1x128xf32>
    %178 = vector.shape_cast %177 : vector<1x128xf32> to vector<128xf32>
    %179 = vector.shape_cast %178 : vector<128xf32> to vector<1x128xf32>
    %180 = vector.broadcast %179 : vector<1x128xf32> to vector<16x128xf32>
    %181 = arith.mulf %176, %180 : vector<16x128xf32>
    %182 = arith.addf %175, %181 : vector<16x128xf32>
    %183 = vector.extract_strided_slice %10 {offsets = [3, 0], sizes = [16, 128], strides = [1, 1]} : vector<22x128xf32> to vector<16x128xf32>
    %184 = vector.extract_strided_slice %6 {offsets = [24, 0], sizes = [1, 128], strides = [1, 1]} : vector<49x128xf32> to vector<1x128xf32>
    %185 = vector.shape_cast %184 : vector<1x128xf32> to vector<128xf32>
    %186 = vector.shape_cast %185 : vector<128xf32> to vector<1x128xf32>
    %187 = vector.broadcast %186 : vector<1x128xf32> to vector<16x128xf32>
    %188 = arith.mulf %183, %187 : vector<16x128xf32>
    %189 = arith.addf %182, %188 : vector<16x128xf32>
    %190 = vector.extract_strided_slice %11 {offsets = [3, 0], sizes = [16, 128], strides = [1, 1]} : vector<22x128xf32> to vector<16x128xf32>
    %191 = vector.extract_strided_slice %6 {offsets = [25, 0], sizes = [1, 128], strides = [1, 1]} : vector<49x128xf32> to vector<1x128xf32>
    %192 = vector.shape_cast %191 : vector<1x128xf32> to vector<128xf32>
    %193 = vector.shape_cast %192 : vector<128xf32> to vector<1x128xf32>
    %194 = vector.broadcast %193 : vector<1x128xf32> to vector<16x128xf32>
    %195 = arith.mulf %190, %194 : vector<16x128xf32>
    %196 = arith.addf %189, %195 : vector<16x128xf32>
    %197 = vector.extract_strided_slice %12 {offsets = [3, 0], sizes = [16, 128], strides = [1, 1]} : vector<22x128xf32> to vector<16x128xf32>
    %198 = vector.extract_strided_slice %6 {offsets = [26, 0], sizes = [1, 128], strides = [1, 1]} : vector<49x128xf32> to vector<1x128xf32>
    %199 = vector.shape_cast %198 : vector<1x128xf32> to vector<128xf32>
    %200 = vector.shape_cast %199 : vector<128xf32> to vector<1x128xf32>
    %201 = vector.broadcast %200 : vector<1x128xf32> to vector<16x128xf32>
    %202 = arith.mulf %197, %201 : vector<16x128xf32>
    %203 = arith.addf %196, %202 : vector<16x128xf32>
    %204 = vector.extract_strided_slice %13 {offsets = [3, 0], sizes = [16, 128], strides = [1, 1]} : vector<22x128xf32> to vector<16x128xf32>
    %205 = vector.extract_strided_slice %6 {offsets = [27, 0], sizes = [1, 128], strides = [1, 1]} : vector<49x128xf32> to vector<1x128xf32>
    %206 = vector.shape_cast %205 : vector<1x128xf32> to vector<128xf32>
    %207 = vector.shape_cast %206 : vector<128xf32> to vector<1x128xf32>
    %208 = vector.broadcast %207 : vector<1x128xf32> to vector<16x128xf32>
    %209 = arith.mulf %204, %208 : vector<16x128xf32>
    %210 = arith.addf %203, %209 : vector<16x128xf32>
    %211 = vector.extract_strided_slice %7 {offsets = [4, 0], sizes = [16, 128], strides = [1, 1]} : vector<22x128xf32> to vector<16x128xf32>
    %212 = vector.extract_strided_slice %6 {offsets = [28, 0], sizes = [1, 128], strides = [1, 1]} : vector<49x128xf32> to vector<1x128xf32>
    %213 = vector.shape_cast %212 : vector<1x128xf32> to vector<128xf32>
    %214 = vector.shape_cast %213 : vector<128xf32> to vector<1x128xf32>
    %215 = vector.broadcast %214 : vector<1x128xf32> to vector<16x128xf32>
    %216 = arith.mulf %211, %215 : vector<16x128xf32>
    %217 = arith.addf %210, %216 : vector<16x128xf32>
    %218 = vector.extract_strided_slice %8 {offsets = [4, 0], sizes = [16, 128], strides = [1, 1]} : vector<22x128xf32> to vector<16x128xf32>
    %219 = vector.extract_strided_slice %6 {offsets = [29, 0], sizes = [1, 128], strides = [1, 1]} : vector<49x128xf32> to vector<1x128xf32>
    %220 = vector.shape_cast %219 : vector<1x128xf32> to vector<128xf32>
    %221 = vector.shape_cast %220 : vector<128xf32> to vector<1x128xf32>
    %222 = vector.broadcast %221 : vector<1x128xf32> to vector<16x128xf32>
    %223 = arith.mulf %218, %222 : vector<16x128xf32>
    %224 = arith.addf %217, %223 : vector<16x128xf32>
    %225 = vector.extract_strided_slice %9 {offsets = [4, 0], sizes = [16, 128], strides = [1, 1]} : vector<22x128xf32> to vector<16x128xf32>
    %226 = vector.extract_strided_slice %6 {offsets = [30, 0], sizes = [1, 128], strides = [1, 1]} : vector<49x128xf32> to vector<1x128xf32>
    %227 = vector.shape_cast %226 : vector<1x128xf32> to vector<128xf32>
    %228 = vector.shape_cast %227 : vector<128xf32> to vector<1x128xf32>
    %229 = vector.broadcast %228 : vector<1x128xf32> to vector<16x128xf32>
    %230 = arith.mulf %225, %229 : vector<16x128xf32>
    %231 = arith.addf %224, %230 : vector<16x128xf32>
    %232 = vector.extract_strided_slice %10 {offsets = [4, 0], sizes = [16, 128], strides = [1, 1]} : vector<22x128xf32> to vector<16x128xf32>
    %233 = vector.extract_strided_slice %6 {offsets = [31, 0], sizes = [1, 128], strides = [1, 1]} : vector<49x128xf32> to vector<1x128xf32>
    %234 = vector.shape_cast %233 : vector<1x128xf32> to vector<128xf32>
    %235 = vector.shape_cast %234 : vector<128xf32> to vector<1x128xf32>
    %236 = vector.broadcast %235 : vector<1x128xf32> to vector<16x128xf32>
    %237 = arith.mulf %232, %236 : vector<16x128xf32>
    %238 = arith.addf %231, %237 : vector<16x128xf32>
    %239 = vector.extract_strided_slice %11 {offsets = [4, 0], sizes = [16, 128], strides = [1, 1]} : vector<22x128xf32> to vector<16x128xf32>
    %240 = vector.extract_strided_slice %6 {offsets = [32, 0], sizes = [1, 128], strides = [1, 1]} : vector<49x128xf32> to vector<1x128xf32>
    %241 = vector.shape_cast %240 : vector<1x128xf32> to vector<128xf32>
    %242 = vector.shape_cast %241 : vector<128xf32> to vector<1x128xf32>
    %243 = vector.broadcast %242 : vector<1x128xf32> to vector<16x128xf32>
    %244 = arith.mulf %239, %243 : vector<16x128xf32>
    %245 = arith.addf %238, %244 : vector<16x128xf32>
    %246 = vector.extract_strided_slice %12 {offsets = [4, 0], sizes = [16, 128], strides = [1, 1]} : vector<22x128xf32> to vector<16x128xf32>
    %247 = vector.extract_strided_slice %6 {offsets = [33, 0], sizes = [1, 128], strides = [1, 1]} : vector<49x128xf32> to vector<1x128xf32>
    %248 = vector.shape_cast %247 : vector<1x128xf32> to vector<128xf32>
    %249 = vector.shape_cast %248 : vector<128xf32> to vector<1x128xf32>
    %250 = vector.broadcast %249 : vector<1x128xf32> to vector<16x128xf32>
    %251 = arith.mulf %246, %250 : vector<16x128xf32>
    %252 = arith.addf %245, %251 : vector<16x128xf32>
    %253 = vector.extract_strided_slice %13 {offsets = [4, 0], sizes = [16, 128], strides = [1, 1]} : vector<22x128xf32> to vector<16x128xf32>
    %254 = vector.extract_strided_slice %6 {offsets = [34, 0], sizes = [1, 128], strides = [1, 1]} : vector<49x128xf32> to vector<1x128xf32>
    %255 = vector.shape_cast %254 : vector<1x128xf32> to vector<128xf32>
    %256 = vector.shape_cast %255 : vector<128xf32> to vector<1x128xf32>
    %257 = vector.broadcast %256 : vector<1x128xf32> to vector<16x128xf32>
    %258 = arith.mulf %253, %257 : vector<16x128xf32>
    %259 = arith.addf %252, %258 : vector<16x128xf32>
    %260 = vector.extract_strided_slice %7 {offsets = [5, 0], sizes = [16, 128], strides = [1, 1]} : vector<22x128xf32> to vector<16x128xf32>
    %261 = vector.extract_strided_slice %6 {offsets = [35, 0], sizes = [1, 128], strides = [1, 1]} : vector<49x128xf32> to vector<1x128xf32>
    %262 = vector.shape_cast %261 : vector<1x128xf32> to vector<128xf32>
    %263 = vector.shape_cast %262 : vector<128xf32> to vector<1x128xf32>
    %264 = vector.broadcast %263 : vector<1x128xf32> to vector<16x128xf32>
    %265 = arith.mulf %260, %264 : vector<16x128xf32>
    %266 = arith.addf %259, %265 : vector<16x128xf32>
    %267 = vector.extract_strided_slice %8 {offsets = [5, 0], sizes = [16, 128], strides = [1, 1]} : vector<22x128xf32> to vector<16x128xf32>
    %268 = vector.extract_strided_slice %6 {offsets = [36, 0], sizes = [1, 128], strides = [1, 1]} : vector<49x128xf32> to vector<1x128xf32>
    %269 = vector.shape_cast %268 : vector<1x128xf32> to vector<128xf32>
    %270 = vector.shape_cast %269 : vector<128xf32> to vector<1x128xf32>
    %271 = vector.broadcast %270 : vector<1x128xf32> to vector<16x128xf32>
    %272 = arith.mulf %267, %271 : vector<16x128xf32>
    %273 = arith.addf %266, %272 : vector<16x128xf32>
    %274 = vector.extract_strided_slice %9 {offsets = [5, 0], sizes = [16, 128], strides = [1, 1]} : vector<22x128xf32> to vector<16x128xf32>
    %275 = vector.extract_strided_slice %6 {offsets = [37, 0], sizes = [1, 128], strides = [1, 1]} : vector<49x128xf32> to vector<1x128xf32>
    %276 = vector.shape_cast %275 : vector<1x128xf32> to vector<128xf32>
    %277 = vector.shape_cast %276 : vector<128xf32> to vector<1x128xf32>
    %278 = vector.broadcast %277 : vector<1x128xf32> to vector<16x128xf32>
    %279 = arith.mulf %274, %278 : vector<16x128xf32>
    %280 = arith.addf %273, %279 : vector<16x128xf32>
    %281 = vector.extract_strided_slice %10 {offsets = [5, 0], sizes = [16, 128], strides = [1, 1]} : vector<22x128xf32> to vector<16x128xf32>
    %282 = vector.extract_strided_slice %6 {offsets = [38, 0], sizes = [1, 128], strides = [1, 1]} : vector<49x128xf32> to vector<1x128xf32>
    %283 = vector.shape_cast %282 : vector<1x128xf32> to vector<128xf32>
    %284 = vector.shape_cast %283 : vector<128xf32> to vector<1x128xf32>
    %285 = vector.broadcast %284 : vector<1x128xf32> to vector<16x128xf32>
    %286 = arith.mulf %281, %285 : vector<16x128xf32>
    %287 = arith.addf %280, %286 : vector<16x128xf32>
    %288 = vector.extract_strided_slice %11 {offsets = [5, 0], sizes = [16, 128], strides = [1, 1]} : vector<22x128xf32> to vector<16x128xf32>
    %289 = vector.extract_strided_slice %6 {offsets = [39, 0], sizes = [1, 128], strides = [1, 1]} : vector<49x128xf32> to vector<1x128xf32>
    %290 = vector.shape_cast %289 : vector<1x128xf32> to vector<128xf32>
    %291 = vector.shape_cast %290 : vector<128xf32> to vector<1x128xf32>
    %292 = vector.broadcast %291 : vector<1x128xf32> to vector<16x128xf32>
    %293 = arith.mulf %288, %292 : vector<16x128xf32>
    %294 = arith.addf %287, %293 : vector<16x128xf32>
    %295 = vector.extract_strided_slice %12 {offsets = [5, 0], sizes = [16, 128], strides = [1, 1]} : vector<22x128xf32> to vector<16x128xf32>
    %296 = vector.extract_strided_slice %6 {offsets = [40, 0], sizes = [1, 128], strides = [1, 1]} : vector<49x128xf32> to vector<1x128xf32>
    %297 = vector.shape_cast %296 : vector<1x128xf32> to vector<128xf32>
    %298 = vector.shape_cast %297 : vector<128xf32> to vector<1x128xf32>
    %299 = vector.broadcast %298 : vector<1x128xf32> to vector<16x128xf32>
    %300 = arith.mulf %295, %299 : vector<16x128xf32>
    %301 = arith.addf %294, %300 : vector<16x128xf32>
    %302 = vector.extract_strided_slice %13 {offsets = [5, 0], sizes = [16, 128], strides = [1, 1]} : vector<22x128xf32> to vector<16x128xf32>
    %303 = vector.extract_strided_slice %6 {offsets = [41, 0], sizes = [1, 128], strides = [1, 1]} : vector<49x128xf32> to vector<1x128xf32>
    %304 = vector.shape_cast %303 : vector<1x128xf32> to vector<128xf32>
    %305 = vector.shape_cast %304 : vector<128xf32> to vector<1x128xf32>
    %306 = vector.broadcast %305 : vector<1x128xf32> to vector<16x128xf32>
    %307 = arith.mulf %302, %306 : vector<16x128xf32>
    %308 = arith.addf %301, %307 : vector<16x128xf32>
    %309 = vector.extract_strided_slice %7 {offsets = [6, 0], sizes = [16, 128], strides = [1, 1]} : vector<22x128xf32> to vector<16x128xf32>
    %310 = vector.extract_strided_slice %6 {offsets = [42, 0], sizes = [1, 128], strides = [1, 1]} : vector<49x128xf32> to vector<1x128xf32>
    %311 = vector.shape_cast %310 : vector<1x128xf32> to vector<128xf32>
    %312 = vector.shape_cast %311 : vector<128xf32> to vector<1x128xf32>
    %313 = vector.broadcast %312 : vector<1x128xf32> to vector<16x128xf32>
    %314 = arith.mulf %309, %313 : vector<16x128xf32>
    %315 = arith.addf %308, %314 : vector<16x128xf32>
    %316 = vector.extract_strided_slice %8 {offsets = [6, 0], sizes = [16, 128], strides = [1, 1]} : vector<22x128xf32> to vector<16x128xf32>
    %317 = vector.extract_strided_slice %6 {offsets = [43, 0], sizes = [1, 128], strides = [1, 1]} : vector<49x128xf32> to vector<1x128xf32>
    %318 = vector.shape_cast %317 : vector<1x128xf32> to vector<128xf32>
    %319 = vector.shape_cast %318 : vector<128xf32> to vector<1x128xf32>
    %320 = vector.broadcast %319 : vector<1x128xf32> to vector<16x128xf32>
    %321 = arith.mulf %316, %320 : vector<16x128xf32>
    %322 = arith.addf %315, %321 : vector<16x128xf32>
    %323 = vector.extract_strided_slice %9 {offsets = [6, 0], sizes = [16, 128], strides = [1, 1]} : vector<22x128xf32> to vector<16x128xf32>
    %324 = vector.extract_strided_slice %6 {offsets = [44, 0], sizes = [1, 128], strides = [1, 1]} : vector<49x128xf32> to vector<1x128xf32>
    %325 = vector.shape_cast %324 : vector<1x128xf32> to vector<128xf32>
    %326 = vector.shape_cast %325 : vector<128xf32> to vector<1x128xf32>
    %327 = vector.broadcast %326 : vector<1x128xf32> to vector<16x128xf32>
    %328 = arith.mulf %323, %327 : vector<16x128xf32>
    %329 = arith.addf %322, %328 : vector<16x128xf32>
    %330 = vector.extract_strided_slice %10 {offsets = [6, 0], sizes = [16, 128], strides = [1, 1]} : vector<22x128xf32> to vector<16x128xf32>
    %331 = vector.extract_strided_slice %6 {offsets = [45, 0], sizes = [1, 128], strides = [1, 1]} : vector<49x128xf32> to vector<1x128xf32>
    %332 = vector.shape_cast %331 : vector<1x128xf32> to vector<128xf32>
    %333 = vector.shape_cast %332 : vector<128xf32> to vector<1x128xf32>
    %334 = vector.broadcast %333 : vector<1x128xf32> to vector<16x128xf32>
    %335 = arith.mulf %330, %334 : vector<16x128xf32>
    %336 = arith.addf %329, %335 : vector<16x128xf32>
    %337 = vector.extract_strided_slice %11 {offsets = [6, 0], sizes = [16, 128], strides = [1, 1]} : vector<22x128xf32> to vector<16x128xf32>
    %338 = vector.extract_strided_slice %6 {offsets = [46, 0], sizes = [1, 128], strides = [1, 1]} : vector<49x128xf32> to vector<1x128xf32>
    %339 = vector.shape_cast %338 : vector<1x128xf32> to vector<128xf32>
    %340 = vector.shape_cast %339 : vector<128xf32> to vector<1x128xf32>
    %341 = vector.broadcast %340 : vector<1x128xf32> to vector<16x128xf32>
    %342 = arith.mulf %337, %341 : vector<16x128xf32>
    %343 = arith.addf %336, %342 : vector<16x128xf32>
    %344 = vector.extract_strided_slice %12 {offsets = [6, 0], sizes = [16, 128], strides = [1, 1]} : vector<22x128xf32> to vector<16x128xf32>
    %345 = vector.extract_strided_slice %6 {offsets = [47, 0], sizes = [1, 128], strides = [1, 1]} : vector<49x128xf32> to vector<1x128xf32>
    %346 = vector.shape_cast %345 : vector<1x128xf32> to vector<128xf32>
    %347 = vector.shape_cast %346 : vector<128xf32> to vector<1x128xf32>
    %348 = vector.broadcast %347 : vector<1x128xf32> to vector<16x128xf32>
    %349 = arith.mulf %344, %348 : vector<16x128xf32>
    %350 = arith.addf %343, %349 : vector<16x128xf32>
    %351 = vector.extract_strided_slice %13 {offsets = [6, 0], sizes = [16, 128], strides = [1, 1]} : vector<22x128xf32> to vector<16x128xf32>
    %352 = vector.extract_strided_slice %6 {offsets = [48, 0], sizes = [1, 128], strides = [1, 1]} : vector<49x128xf32> to vector<1x128xf32>
    %353 = vector.shape_cast %352 : vector<1x128xf32> to vector<128xf32>
    %354 = vector.shape_cast %353 : vector<128xf32> to vector<1x128xf32>
    %355 = vector.broadcast %354 : vector<1x128xf32> to vector<16x128xf32>
    %356 = arith.mulf %351, %355 : vector<16x128xf32>
    %357 = arith.addf %350, %356 : vector<16x128xf32>
    %c0_9 = arith.constant 0 : index
    %c0_10 = arith.constant 0 : index
    %c0_11 = arith.constant 0 : index
    %358 = vector.load %arg3[%c0_9, %c0_10, %c0_11] : memref<1x16x128xf32, #tpu.memory_space<vmem>>, vector<1x16x128xf32>
    %359 = vector.shape_cast %358 : vector<1x16x128xf32> to vector<16x128xf32>
    %360 = vector.shape_cast %357 : vector<16x128xf32> to vector<1x16x128xf32>
    tpu.vector_store %arg3[%c0_9, %c0_10, %c0_11], %360 {strides = array<i32>} : memref<1x16x128xf32, #tpu.memory_space<vmem>>, vector<1x16x128xf32>,
    %cst_12 = arith.constant dense<0.000000e+00> : vector<128xf32>
    %361 = vector.multi_reduction <add>, %357, %cst_12 [0] : vector<16x128xf32> to vector<128xf32>
    %362 = vector.shape_cast %361 : vector<128xf32> to vector<1x128xf32>
    %363 = arith.mulf %357, %357 : vector<16x128xf32>
    %cst_13 = arith.constant dense<0.000000e+00> : vector<128xf32>
    %364 = vector.multi_reduction <add>, %363, %cst_13 [0] : vector<16x128xf32> to vector<128xf32>
    %365 = vector.shape_cast %364 : vector<128xf32> to vector<1x128xf32>
    %366 = tpu.concatenate %362, %365 in 0 : vector<1x128xf32>, vector<1x128xf32> -> vector<2x128xf32>
    %c0_14 = arith.constant 0 : index
    %c0_15 = arith.constant 0 : index
    %c0_16 = arith.constant 0 : index
    %367 = vector.load %arg4[%c0_14, %c0_15, %c0_16] : memref<1x2x128xf32, #tpu.memory_space<vmem>>, vector<1x2x128xf32>
    %368 = vector.shape_cast %367 : vector<1x2x128xf32> to vector<2x128xf32>
    %369 = vector.shape_cast %366 : vector<2x128xf32> to vector<1x2x128xf32>
    tpu.vector_store %arg4[%c0_14, %c0_15, %c0_16], %369 {strides = array<i32>} : memref<1x2x128xf32, #tpu.memory_space<vmem>>, vector<1x2x128xf32>,
    return
  }
  func.func @transform_0(%arg0: i32) -> (i32, i32, i32) {
    %c0_i32 = arith.constant 0 : i32
    %c0_i32_0 = arith.constant 0 : i32
    %c0_i32_1 = arith.constant 0 : i32
    return %arg0, %c0_i32, %c0_i32_0 : i32, i32, i32
  }
  func.func @transform_1(%arg0: i32) -> (i32, i32) {
    %c0_i32 = arith.constant 0 : i32
    %c0_i32_0 = arith.constant 0 : i32
    %c0_i32_1 = arith.constant 0 : i32
    return %c0_i32, %c0_i32_0 : i32, i32
  }
  func.func @transform_2(%arg0: i32) -> (i32, i32, i32) {
    %c0_i32 = arith.constant 0 : i32
    %c0_i32_0 = arith.constant 0 : i32
    %c0_i32_1 = arith.constant 0 : i32
    return %arg0, %c0_i32, %c0_i32_0 : i32, i32, i32
  }
  func.func @transform_3(%arg0: i32) -> (i32, i32, i32) {
    %c0_i32 = arith.constant 0 : i32
    %c0_i32_0 = arith.constant 0 : i32
    %c0_i32_1 = arith.constant 0 : i32
    return %arg0, %c0_i32, %c0_i32_0 : i32, i32, i32
  }
}

</mosaic_0001>

<llo_original>
// kernel: tile.26
$region0: #{tile.26}
  #allocation0 [shape = 's32[1]{0}', space=sflag, size = 0x4, scoped, tag = 'scoped memory for tile.26']
  %s0 = inlined_call_operand.vmem [shape: f32[8], index: 0, kind: input, shape index: {}]
  %s1 = inlined_call_operand.vmem [shape: f32[16,8], index: 1, kind: output, shape index: {}]
  // Predicated region
  $region2: #{tile.26} parent=0 // pred_check
    _
  $region3: #{tile.26} parent=0 // pred_check_branch
    %3 = sbr.rel (0) target = $region5
  $region4: #{tile.26} parent=0 // pred_region
    _
  $region5: #{tile.26} parent=0 // pred_fallthru
    _
  %v4 = vld [vmem:[%s0] ss:$0 sm:$0xff]
  %5 = vst [vmem:[%s1] sm:$0xff] %v4
  %s6 = scalar_lea.vmem %s1, 8
  %7 = vst [vmem:[%s6] sm:$0xff] %v4

// kernel: global_mixer.1
$region0: #{global_mixer.1}
  #allocation0 [shape = 'u32[]', space=smem, size = 0x4, offset = 0x4, fixed_abs, tag = 'smem constant byte address 0x4 - core index']
  #allocation1 [shape = 'u32[144,128]{1,0:T(1,128)}', space=vmem, size = 0x12000, scoped, tag = 'internal scratch']
  #allocation2 [shape = 'f32[22,176]{1,0:T(8,128)}', space=vmem, size = 0x6000, scoped, tag = 'scratch operand']
  %s0 = inlined_call_operand.vmem [shape: f32[2,16,128], index: 0, kind: input, shape index: {}]
  %s1 = inlined_call_operand.vmem [shape: f32[49,128], index: 1, kind: input, shape index: {}]
  %s2 = inlined_call_operand.vmem [shape: f32[2,16,128], index: 2, kind: output, shape index: {0}]
  %s3 = inlined_call_operand.vmem [shape: f32[2,2,128], index: 3, kind: output, shape index: {1}]
  %4 = xla_tuple %s2, %s3
  %s5 = sld [smem:[#allocation0]]
  $region49: #{global_mixer.1} parent=0
    _
  %s7 = ssub.s32 1, %s5
  %s8 = scalar_select 0, %s7, %s5
  loop: start=0, step=1, limit=4
  $region2: #{global_mixer.1} parent=0 // loop_pre_header
    _
  $region3: #{global_mixer.1} parent=0 // loop_header
    %s10 = sphi 0, %s14
    %p11 = scmp.ge.s32.totalorder %s10, 4
    %s20 = sphi 0, %s22
    %s23 = sphi 0, %s20
    %s24 = sphi 0, %s23
    %s40 = sphi 0, %s24
    %s44 = sphi 0, %s44
    %s46 = sphi 0, %s44
    %s47 = sphi 0, %s46
    %s61 = sphi 0, %s47
    %s67 = sphi 0, %s69
    %s70 = sphi 0, %s67
    %s71 = sphi 0, %s70
    %s87 = sphi 0, %s71
    %s93 = sphi 0, %s95
    %s96 = sphi 0, %s93
    %s97 = sphi 0, %s96
    %s113 = sphi 0, %s97
  $region4: #{global_mixer.1} parent=0 // loop_header_branch
    %13 = sbr.rel (%p11) target = $region8
  $region5: #{global_mixer.1} parent=0 // loop_body
    %s15 = ssub.s32 %s10, 1
    %s16 = ssub.s32 %s10, 2
    %s17 = sadd.s32 %s10, 1
    %s18 = ssub.s32 %s10, %s17
    %p19 = scmp.eq.s32.totalorder %s18, 0
    %s21 = sadd.s32 %s20, 1
    %s22 = scalar_select %p19, %s20, %s21
    %p25 = pneg %p19
    %p26 = scmp.eq.s32.totalorder %s10, 1
    %p27 = por %p25, %p26
    %p28 = scmp.ne.s32.totalorder %s20, %s23
    %p29 = scmp.eq.s32.totalorder %s10, 0
    %p30 = por %p28, %p29
    %p31 = scmp.ne.s32.totalorder %s20, %s23
    %p32 = scmp.eq.s32.totalorder %s15, 1
    %p33 = por %p31, %p32
    %p34 = scmp.ne.s32.totalorder %s23, %s24
    %p35 = scmp.eq.s32.totalorder %s15, 0
    %p36 = por %p34, %p35
    %p37 = scmp.ne.s32.totalorder %s23, %s24
    %p38 = scmp.eq.s32.totalorder %s16, 1
    %p39 = por %p37, %p38
    %p41 = scmp.ne.s32.totalorder %s24, %s40
    %p42 = scmp.eq.s32.totalorder %s16, 0
    %p43 = por %p41, %p42
    %s45 = sadd.s32 %s44, 1
    %p48 = scmp.eq.s32.totalorder %s10, 1
    %p49 = scmp.ne.s32.totalorder %s44, %s46
    %p50 = scmp.eq.s32.totalorder %s10, 0
    %p51 = por %p49, %p50
    %p52 = scmp.ne.s32.totalorder %s44, %s46
    %p53 = scmp.eq.s32.totalorder %s15, 1
    %p54 = por %p52, %p53
    %p55 = scmp.ne.s32.totalorder %s46, %s47
    %p56 = scmp.eq.s32.totalorder %s15, 0
    %p57 = por %p55, %p56
    %p58 = scmp.ne.s32.totalorder %s46, %s47
    %p59 = scmp.eq.s32.totalorder %s16, 1
    %p60 = por %p58, %p59
    %p62 = scmp.ne.s32.totalorder %s47, %s61
    %p63 = scmp.eq.s32.totalorder %s16, 0
    %p64 = por %p62, %p63
    %s65 = ssub.s32 %s10, %s17
    %p66 = scmp.eq.s32.totalorder %s65, 0
    %s68 = sadd.s32 %s67, 1
    %s69 = scalar_select %p66, %s67, %s68
    %p72 = pneg %p66
    %p73 = scmp.eq.s32.totalorder %s10, 1
    %p74 = por %p72, %p73
    %p75 = scmp.ne.s32.totalorder %s67, %s70
    %p76 = scmp.eq.s32.totalorder %s10, 0
    %p77 = por %p75, %p76
    %p78 = scmp.ne.s32.totalorder %s67, %s70
    %p79 = scmp.eq.s32.totalorder %s15, 1
    %p80 = por %p78, %p79
    %p81 = scmp.ne.s32.totalorder %s70, %s71
    %p82 = scmp.eq.s32.totalorder %s15, 0
    %p83 = por %p81, %p82
    %p84 = scmp.ne.s32.totalorder %s70, %s71
    %p85 = scmp.eq.s32.totalorder %s16, 1
    %p86 = por %p84, %p85
    %p88 = scmp.ne.s32.totalorder %s71, %s87
    %p89 = scmp.eq.s32.totalorder %s16, 0
    %p90 = por %p88, %p89
    %s91 = ssub.s32 %s10, %s17
    %p92 = scmp.eq.s32.totalorder %s91, 0
    %s94 = sadd.s32 %s93, 1
    %s95 = scalar_select %p92, %s93, %s94
    %p98 = pneg %p92
    %p99 = scmp.eq.s32.totalorder %s10, 1
    %p100 = por %p98, %p99
    %p101 = scmp.ne.s32.totalorder %s93, %s96
    %p102 = scmp.eq.s32.totalorder %s10, 0
    %p103 = por %p101, %p102
    %p104 = scmp.ne.s32.totalorder %s93, %s96
    %p105 = scmp.eq.s32.totalorder %s15, 1
    %p106 = por %p104, %p105
    %p107 = scmp.ne.s32.totalorder %s96, %s97
    %p108 = scmp.eq.s32.totalorder %s15, 0
    %p109 = por %p107, %p108
    %p110 = scmp.ne.s32.totalorder %s96, %s97
    %p111 = scmp.eq.s32.totalorder %s16, 1
    %p112 = por %p110, %p111
    %p114 = scmp.ne.s32.totalorder %s97, %s113
    %p115 = scmp.eq.s32.totalorder %s16, 0
    %p116 = por %p114, %p115
    %p117 = scmp.le.s32.totalorder 1, %s10
    %p118 = scmp.lt.s32.totalorder %s10, 3
    %p119 = pnand %p117, %p118
    %p120 = pneg %p119
    // Predicated region
    $region9: #{global_mixer.1} parent=5 // pred_check
      _
    $region10: #{global_mixer.1} parent=5 // pred_check_branch
      %122 = sbr.rel (%p119) target = $region12
    $region11: #{global_mixer.1} parent=5 // pred_region
      %s123 = ssub.s32 %s10, 1
      // Predicated region
      $region13: #{global_mixer.1} parent=11 // pred_check
        %p124 = pneg %p57
      $region14: #{global_mixer.1} parent=11 // pred_check_branch
        %126 = sbr.rel (%p124) target = $region16
      $region15: #{global_mixer.1} parent=11 // pred_region
        _
      $region16: #{global_mixer.1} parent=11 // pred_fallthru
        _
    $region12: #{global_mixer.1} parent=5 // pred_fallthru
      _
    %p127 = scmp.lt.s32.totalorder %s10, 2
    // Predicated region
    $region17: #{global_mixer.1} parent=5 // pred_check
      %p128 = pneg %p127
    $region18: #{global_mixer.1} parent=5 // pred_check_branch
      %130 = sbr.rel (%p128) target = $region20
    $region19: #{global_mixer.1} parent=5 // pred_region
      // Predicated region
      $region21: #{global_mixer.1} parent=19 // pred_check
        %p131 = pneg %p30
      $region22: #{global_mixer.1} parent=19 // pred_check_branch
        %133 = sbr.rel (%p131) target = $region24
      $region23: #{global_mixer.1} parent=19 // pred_region
        %p134 = scmp.lt.s32.totalorder %s10, 1
        %s135 = scalar_select %p134, %s10, 1
        %s136 = smul.addr %s135, 2
        %s137 = smul.addr %s136, 8
        %s138 = scalar_lea.vmem %s0, %s137
      $region24: #{global_mixer.1} parent=19 // pred_fallthru
        _
    $region20: #{global_mixer.1} parent=5 // pred_fallthru
      _
    %p139 = scmp.le.s32.totalorder 1, %s10
    %p140 = scmp.lt.s32.totalorder %s10, 3
    %p141 = pnand %p139, %p140
    %p142 = pneg %p141
    // Predicated region
    $region25: #{global_mixer.1} parent=5 // pred_check
      _
    $region26: #{global_mixer.1} parent=5 // pred_check_branch
      %144 = sbr.rel (%p141) target = $region28
    $region27: #{global_mixer.1} parent=5 // pred_region
      %s145 = ssub.s32 %s10, 1
      %p146 = scmp.lt.s32.totalorder %s15, 1
      %s147 = scalar_select %p146, %s15, 1
      %s148 = smul.addr %s147, 2
      %s149 = smul.addr %s148, 8
      %s150 = scalar_lea.vmem %s0, %s149
      %p151 = pneg %p36
      %p152 = pneg %p33
      %p153 = pneg %p57
      %p154 = pneg %p54
      %p155 = pneg %p83
      %p156 = pneg %p80
      %p157 = scmp.lt.s32.totalorder %s15, 1
      %s158 = scalar_select %p157, %s15, 1
      %s159 = smul.addr %s158, 2
      %s160 = smul.addr %s159, 8
      %s161 = scalar_lea.vmem %s2, %s160
      %p162 = pneg %p109
      %p163 = pneg %p106
      %p164 = scmp.lt.s32.totalorder %s15, 1
      %s165 = scalar_select %p164, %s15, 1
      %s166 = smul.addr %s165, 2
      %s167 = scalar_lea.vmem %s3, %s166
      %p168 = scmp.lt.s32.totalorder %s15, 1
      %s169 = scalar_select %p168, %s15, 1
      %s170 = smul.addr %s169, 2
      %s171 = smul.addr %s170, 8
      %s172 = scalar_lea.vmem %s0, %s171
      %p173 = scmp.lt.s32.totalorder %s15, 1
      %s174 = scalar_select %p173, %s15, 1
      %s175 = smul.addr %s174, 2
      %s176 = smul.addr %s175, 8
      %s177 = scalar_lea.vmem %s2, %s176
      %p178 = scmp.lt.s32.totalorder %s15, 1
      %s179 = scalar_select %p178, %s15, 1
      %s180 = smul.addr %s179, 2
      %s181 = scalar_lea.vmem %s3, %s180
      %182 = vst [vmem:[#allocation2] sm:$0xff] 0.0
      %vm183 = vcmask 392192
      %184 = vst.msk [vmem:[#allocation2 + $0x8] sm:$0xff] %vm183, 0.0
      %185 = vst [vmem:[#allocation2 + $0x10] sm:$0xff] 0.0
      %186 = vst.msk [vmem:[#allocation2 + $0x18] sm:$0xff] %vm183, 0.0
      %187 = vst [vmem:[#allocation2 + $0x20] sm:$0x3f] 0.0
      %vm188 = vcmask 390144
      %189 = vst.msk [vmem:[#allocation2 + $0x28] sm:$0x3f] %vm188, 0.0
      %v190 = vld [vmem:[%s172] sm:$0xff]
      %v191 = vld [vmem:[%s172 + $0x8] sm:$0xff]
      %vm194 = vcmask 1042432
      %v195 = vrot.slane %v190, 5
      %v196 = vrot.slane %v191, 5
      %v197 = vsel %vm194, %v195, %v196
      %198 = vrot.lane.b32.xlu0 %v195, 24
      %v199 = vpop.permute.xlu0 %198
      %200 = vrot.lane.b32.xlu0 %v197, 24
      %v201 = vpop.permute.xlu0 %200
      %202 = vrot.lane.b32.xlu0 %v196, 24
      %v203 = vpop.permute.xlu0 %202
      %vm207 = vcmask 1047747
      %208 = vst.msk [vmem:[#allocation2] sm:$0xf8] %vm207, %v199
      %vm209 = vcmask 195587
      %210 = vst.msk [vmem:[#allocation2 + $0x8] sm:$0xf8] %vm209, %v199
      %vm211 = vcmask 1047744
      %212 = vst.msk [vmem:[#allocation2 + $0x10] sm:$0xff] %vm211, %v201
      %vm213 = vcmask 195584
      %214 = vst.msk [vmem:[#allocation2 + $0x18] sm:$0xff] %vm213, %v201
      %vm215 = vcmask 1042624
      %216 = vst.msk [vmem:[#allocation2 + $0x20] sm:$0x7] %vm215, %v203
      %vm217 = vcmask 190464
      %218 = vst.msk [vmem:[#allocation2 + $0x28] sm:$0x7] %vm217, %v203
      %v219 = vld [vmem:[#allocation2] sm:$0xff]
      %v220 = vld [vmem:[#allocation2 + $0x8] sm:$0xff]
      %v221 = vld [vmem:[#allocation2 + $0x10] sm:$0xff]
      %v222 = vld [vmem:[#allocation2 + $0x18] sm:$0xff]
      %v223 = vld [vmem:[#allocation2 + $0x20] sm:$0x3f]
      %v224 = vld [vmem:[#allocation2 + $0x28] sm:$0x3f]
      %v225 = vld [vmem:[%s1] sm:$0xff]
      %v226 = vld [vmem:[%s1 + $0x8] sm:$0xff]
      %v227 = vld [vmem:[%s1 + $0x10] sm:$0xff]
      %v228 = vld [vmem:[%s1 + $0x18] sm:$0xff]
      %v229 = vld [vmem:[%s1 + $0x20] sm:$0xff]
      %v230 = vld [vmem:[%s1 + $0x28] sm:$0xff]
      %v231 = vld [vmem:[%s1 + $0x30] sm:$0x1]
      %v232 = vlaneseq
      %v233 = vshrl.u32 %v232, 7
      %v234 = vsub.s32 0, %v233
      %v235 = vrot.slane %v225, %v234
      %v236 = vmul.f32 %v219, %v235
      %v237 = vmul.f32 %v221, %v235
      %v238 = vadd.f32 %v236, 0.0
      %v239 = vadd.f32 %v237, 0.0
      %v240 = vlaneseq
      %v241 = vshrl.u32 %v240, 7
      %v242 = vsub.s32 1, %v241
      %v243 = vrot.slane %v225, %v242
      %245 = vrot.lane.b32.xlu0 %v243, 8
      %v246 = vpop.permute.xlu0 %245
      %v248 = vmul.f32 %v219, %v246
      %v249 = vmul.f32 %v220, %v246
      %v250 = vmul.f32 %v221, %v246
      %v251 = vmul.f32 %v222, %v246
      %256 = vrot.lane.b32.xlu0 %v248, 120
      %v257 = vpop.permute.xlu0 %256
      %258 = vrot.lane.b32.xlu0 %v249, 120
      %v259 = vpop.permute.xlu0 %258
      %260 = vrot.lane.b32.xlu0 %v250, 120
      %v261 = vpop.permute.xlu0 %260
      %262 = vrot.lane.b32.xlu0 %v251, 120
      %v263 = vpop.permute.xlu0 %262
      %vm264 = vcmask 982016
      %v265 = vsel %vm264, %v257, %v259
      %v266 = vsel %vm264, %v261, %v263
      %v269 = vadd.f32 %v238, %v265
      %v270 = vadd.f32 %v239, %v266
      %v271 = vlaneseq
      %v272 = vshrl.u32 %v271, 7
      %v273 = vsub.s32 2, %v272
      %v274 = vrot.slane %v225, %v273
      %276 = vrot.lane.b32.xlu0 %v274, 16
      %v277 = vpop.permute.xlu0 %276
      %v279 = vmul.f32 %v219, %v277
      %v280 = vmul.f32 %v220, %v277
      %v281 = vmul.f32 %v221, %v277
      %v282 = vmul.f32 %v222, %v277
      %287 = vrot.lane.b32.xlu0 %v279, 112
      %v288 = vpop.permute.xlu0 %287
      %289 = vrot.lane.b32.xlu0 %v280, 112
      %v290 = vpop.permute.xlu0 %289
      %291 = vrot.lane.b32.xlu0 %v281, 112
      %v292 = vpop.permute.xlu0 %291
      %293 = vrot.lane.b32.xlu0 %v282, 112
      %v294 = vpop.permute.xlu0 %293
      %vm295 = vcmask 916480
      %v296 = vsel %vm295, %v288, %v290
      %v297 = vsel %vm295, %v292, %v294
      %v300 = vadd.f32 %v269, %v296
      %v301 = vadd.f32 %v270, %v297
      %v302 = vlaneseq
      %v303 = vshrl.u32 %v302, 7
      %v304 = vsub.s32 3, %v303
      %v305 = vrot.slane %v225, %v304
      %307 = vrot.lane.b32.xlu0 %v305, 24
      %v308 = vpop.permute.xlu0 %307
      %v310 = vmul.f32 %v219, %v308
      %v311 = vmul.f32 %v220, %v308
      %v312 = vmul.f32 %v221, %v308
      %v313 = vmul.f32 %v222, %v308
      %318 = vrot.lane.b32.xlu0 %v310, 104
      %v319 = vpop.permute.xlu0 %318
      %320 = vrot.lane.b32.xlu0 %v311, 104
      %v321 = vpop.permute.xlu0 %320
      %322 = vrot.lane.b32.xlu0 %v312, 104
      %v323 = vpop.permute.xlu0 %322
      %324 = vrot.lane.b32.xlu0 %v313, 104
      %v325 = vpop.permute.xlu0 %324
      %vm326 = vcmask 850944
      %v327 = vsel %vm326, %v319, %v321
      %v328 = vsel %vm326, %v323, %v325
      %v331 = vadd.f32 %v300, %v327
      %v332 = vadd.f32 %v301, %v328
      %v333 = vlaneseq
      %v334 = vshrl.u32 %v333, 7
      %v335 = vsub.s32 4, %v334
      %v336 = vrot.slane %v225, %v335
      %338 = vrot.lane.b32.xlu0 %v336, 32
      %v339 = vpop.permute.xlu0 %338
      %v341 = vmul.f32 %v219, %v339
      %v342 = vmul.f32 %v220, %v339
      %v343 = vmul.f32 %v221, %v339
      %v344 = vmul.f32 %v222, %v339
      %349 = vrot.lane.b32.xlu0 %v341, 96
      %v350 = vpop.permute.xlu0 %349
      %351 = vrot.lane.b32.xlu0 %v342, 96
      %v352 = vpop.permute.xlu0 %351
      %353 = vrot.lane.b32.xlu0 %v343, 96
      %v354 = vpop.permute.xlu0 %353
      %355 = vrot.lane.b32.xlu0 %v344, 96
      %v356 = vpop.permute.xlu0 %355
      %vm357 = vcmask 785408
      %v358 = vsel %vm357, %v350, %v352
      %v359 = vsel %vm357, %v354, %v356
      %v362 = vadd.f32 %v331, %v358
      %v363 = vadd.f32 %v332, %v359
      %v364 = vlaneseq
      %v365 = vshrl.u32 %v364, 7
      %v366 = vsub.s32 5, %v365
      %v367 = vrot.slane %v225, %v366
      %369 = vrot.lane.b32.xlu0 %v367, 40
      %v370 = vpop.permute.xlu0 %369
      %v372 = vmul.f32 %v219, %v370
      %v373 = vmul.f32 %v220, %v370
      %v374 = vmul.f32 %v221, %v370
      %v375 = vmul.f32 %v222, %v370
      %380 = vrot.lane.b32.xlu0 %v372, 88
      %v381 = vpop.permute.xlu0 %380
      %382 = vrot.lane.b32.xlu0 %v373, 88
      %v383 = vpop.permute.xlu0 %382
      %384 = vrot.lane.b32.xlu0 %v374, 88
      %v385 = vpop.permute.xlu0 %384
      %386 = vrot.lane.b32.xlu0 %v375, 88
      %v387 = vpop.permute.xlu0 %386
      %vm388 = vcmask 719872
      %v389 = vsel %vm388, %v381, %v383
      %v390 = vsel %vm388, %v385, %v387
      %v393 = vadd.f32 %v362, %v389
      %v394 = vadd.f32 %v363, %v390
      %v395 = vlaneseq
      %v396 = vshrl.u32 %v395, 7
      %v397 = vsub.s32 6, %v396
      %v398 = vrot.slane %v225, %v397
      %400 = vrot.lane.b32.xlu0 %v398, 48
      %v401 = vpop.permute.xlu0 %400
      %v403 = vmul.f32 %v219, %v401
      %v404 = vmul.f32 %v220, %v401
      %v405 = vmul.f32 %v221, %v401
      %v406 = vmul.f32 %v222, %v401
      %411 = vrot.lane.b32.xlu0 %v403, 80
      %v412 = vpop.permute.xlu0 %411
      %413 = vrot.lane.b32.xlu0 %v404, 80
      %v414 = vpop.permute.xlu0 %413
      %415 = vrot.lane.b32.xlu0 %v405, 80
      %v416 = vpop.permute.xlu0 %415
      %417 = vrot.lane.b32.xlu0 %v406, 80
      %v418 = vpop.permute.xlu0 %417
      %vm419 = vcmask 654336
      %v420 = vsel %vm419, %v412, %v414
      %v421 = vsel %vm419, %v416, %v418
      %v424 = vadd.f32 %v393, %v420
      %v425 = vadd.f32 %v394, %v421
      %v426 = vlaneseq
      %v427 = vshrl.u32 %v426, 7
      %v428 = vsub.s32 7, %v427
      %v429 = vrot.slane %v225, %v428
      %v430 = vmul.f32 %v219, %v429
      %v431 = vmul.f32 %v221, %v429
      %v432 = vmul.f32 %v223, %v429
      %vm436 = vcmask 1046528
      %v437 = vrot.slane %v430, 1
      %v438 = vrot.slane %v431, 1
      %v439 = vsel %vm436, %v437, %v438
      %v440 = vrot.slane %v432, 1
      %v441 = vsel %vm436, %v438, %v440
      %v444 = vadd.f32 %v424, %v439
      %v445 = vadd.f32 %v425, %v441
      %v446 = vlaneseq
      %v447 = vshrl.u32 %v446, 7
      %v448 = vsub.s32 0, %v447
      %v449 = vrot.slane %v226, %v448
      %451 = vrot.lane.b32.xlu0 %v449, 8
      %v452 = vpop.permute.xlu0 %451
      %v454 = vmul.f32 %v219, %v452
      %v455 = vmul.f32 %v220, %v452
      %v456 = vmul.f32 %v221, %v452
      %v457 = vmul.f32 %v222, %v452
      %v458 = vmul.f32 %v223, %v452
      %v459 = vmul.f32 %v224, %v452
      %v466 = vrot.slane %v454, 1
      %v467 = vrot.slane %v456, 1
      %v468 = vsel %vm436, %v466, %v467
      %v469 = vrot.slane %v455, 1
      %v470 = vrot.slane %v457, 1
      %v471 = vsel %vm436, %v469, %v470
      %v472 = vrot.slane %v458, 1
      %v473 = vsel %vm436, %v467, %v472
      %v474 = vrot.slane %v459, 1
      %v475 = vsel %vm436, %v470, %v474
      %476 = vrot.lane.b32.xlu0 %v468, 120
      %v477 = vpop.permute.xlu0 %476
      %478 = vrot.lane.b32.xlu0 %v471, 120
      %v479 = vpop.permute.xlu0 %478
      %480 = vrot.lane.b32.xlu0 %v473, 120
      %v481 = vpop.permute.xlu0 %480
      %482 = vrot.lane.b32.xlu0 %v475, 120
      %v483 = vpop.permute.xlu0 %482
      %v484 = vsel %vm264, %v477, %v479
      %v485 = vsel %vm264, %v481, %v483
      %v488 = vadd.f32 %v444, %v484
      %v489 = vadd.f32 %v445, %v485
      %v490 = vlaneseq
      %v491 = vshrl.u32 %v490, 7
      %v492 = vsub.s32 1, %v491
      %v493 = vrot.slane %v226, %v492
      %495 = vrot.lane.b32.xlu0 %v493, 16
      %v496 = vpop.permute.xlu0 %495
      %v498 = vmul.f32 %v219, %v496
      %v499 = vmul.f32 %v220, %v496
      %v500 = vmul.f32 %v221, %v496
      %v501 = vmul.f32 %v222, %v496
      %v502 = vmul.f32 %v223, %v496
      %v503 = vmul.f32 %v224, %v496
      %v510 = vrot.slane %v498, 1
      %v511 = vrot.slane %v500, 1
      %v512 = vsel %vm436, %v510, %v511
      %v513 = vrot.slane %v499, 1
      %v514 = vrot.slane %v501, 1
      %v515 = vsel %vm436, %v513, %v514
      %v516 = vrot.slane %v502, 1
      %v517 = vsel %vm436, %v511, %v516
      %v518 = vrot.slane %v503, 1
      %v519 = vsel %vm436, %v514, %v518
      %520 = vrot.lane.b32.xlu0 %v512, 112
      %v521 = vpop.permute.xlu0 %520
      %522 = vrot.lane.b32.xlu0 %v515, 112
      %v523 = vpop.permute.xlu0 %522
      %524 = vrot.lane.b32.xlu0 %v517, 112
      %v525 = vpop.permute.xlu0 %524
      %526 = vrot.lane.b32.xlu0 %v519, 112
      %v527 = vpop.permute.xlu0 %526
      %v528 = vsel %vm295, %v521, %v523
      %v529 = vsel %vm295, %v525, %v527
      %v532 = vadd.f32 %v488, %v528
      %v533 = vadd.f32 %v489, %v529
      %v534 = vlaneseq
      %v535 = vshrl.u32 %v534, 7
      %v536 = vsub.s32 2, %v535
      %v537 = vrot.slane %v226, %v536
      %539 = vrot.lane.b32.xlu0 %v537, 24
      %v540 = vpop.permute.xlu0 %539
      %v542 = vmul.f32 %v219, %v540
      %v543 = vmul.f32 %v220, %v540
      %v544 = vmul.f32 %v221, %v540
      %v545 = vmul.f32 %v222, %v540
      %v546 = vmul.f32 %v223, %v540
      %v547 = vmul.f32 %v224, %v540
      %v554 = vrot.slane %v542, 1
      %v555 = vrot.slane %v544, 1
      %v556 = vsel %vm436, %v554, %v555
      %v557 = vrot.slane %v543, 1
      %v558 = vrot.slane %v545, 1
      %v559 = vsel %vm436, %v557, %v558
      %v560 = vrot.slane %v546, 1
      %v561 = vsel %vm436, %v555, %v560
      %v562 = vrot.slane %v547, 1
      %v563 = vsel %vm436, %v558, %v562
      %564 = vrot.lane.b32.xlu0 %v556, 104
      %v565 = vpop.permute.xlu0 %564
      %566 = vrot.lane.b32.xlu0 %v559, 104
      %v567 = vpop.permute.xlu0 %566
      %568 = vrot.lane.b32.xlu0 %v561, 104
      %v569 = vpop.permute.xlu0 %568
      %570 = vrot.lane.b32.xlu0 %v563, 104
      %v571 = vpop.permute.xlu0 %570
      %v572 = vsel %vm326, %v565, %v567
      %v573 = vsel %vm326, %v569, %v571
      %v576 = vadd.f32 %v532, %v572
      %v577 = vadd.f32 %v533, %v573
      %v578 = vlaneseq
      %v579 = vshrl.u32 %v578, 7
      %v580 = vsub.s32 3, %v579
      %v581 = vrot.slane %v226, %v580
      %583 = vrot.lane.b32.xlu0 %v581, 32
      %v584 = vpop.permute.xlu0 %583
      %v586 = vmul.f32 %v219, %v584
      %v587 = vmul.f32 %v220, %v584
      %v588 = vmul.f32 %v221, %v584
      %v589 = vmul.f32 %v222, %v584
      %v590 = vmul.f32 %v223, %v584
      %v591 = vmul.f32 %v224, %v584
      %v598 = vrot.slane %v586, 1
      %v599 = vrot.slane %v588, 1
      %v600 = vsel %vm436, %v598, %v599
      %v601 = vrot.slane %v587, 1
      %v602 = vrot.slane %v589, 1
      %v603 = vsel %vm436, %v601, %v602
      %v604 = vrot.slane %v590, 1
      %v605 = vsel %vm436, %v599, %v604
      %v606 = vrot.slane %v591, 1
      %v607 = vsel %vm436, %v602, %v606
      %608 = vrot.lane.b32.xlu0 %v600, 96
      %v609 = vpop.permute.xlu0 %608
      %610 = vrot.lane.b32.xlu0 %v603, 96
      %v611 = vpop.permute.xlu0 %610
      %612 = vrot.lane.b32.xlu0 %v605, 96
      %v613 = vpop.permute.xlu0 %612
      %614 = vrot.lane.b32.xlu0 %v607, 96
      %v615 = vpop.permute.xlu0 %614
      %v616 = vsel %vm357, %v609, %v611
      %v617 = vsel %vm357, %v613, %v615
      %v620 = vadd.f32 %v576, %v616
      %v621 = vadd.f32 %v577, %v617
      %v622 = vlaneseq
      %v623 = vshrl.u32 %v622, 7
      %v624 = vsub.s32 4, %v623
      %v625 = vrot.slane %v226, %v624
      %627 = vrot.lane.b32.xlu0 %v625, 40
      %v628 = vpop.permute.xlu0 %627
      %v630 = vmul.f32 %v219, %v628
      %v631 = vmul.f32 %v220, %v628
      %v632 = vmul.f32 %v221, %v628
      %v633 = vmul.f32 %v222, %v628
      %v634 = vmul.f32 %v223, %v628
      %v635 = vmul.f32 %v224, %v628
      %v642 = vrot.slane %v630, 1
      %v643 = vrot.slane %v632, 1
      %v644 = vsel %vm436, %v642, %v643
      %v645 = vrot.slane %v631, 1
      %v646 = vrot.slane %v633, 1
      %v647 = vsel %vm436, %v645, %v646
      %v648 = vrot.slane %v634, 1
      %v649 = vsel %vm436, %v643, %v648
      %v650 = vrot.slane %v635, 1
      %v651 = vsel %vm436, %v646, %v650
      %652 = vrot.lane.b32.xlu0 %v644, 88
      %v653 = vpop.permute.xlu0 %652
      %654 = vrot.lane.b32.xlu0 %v647, 88
      %v655 = vpop.permute.xlu0 %654
      %656 = vrot.lane.b32.xlu0 %v649, 88
      %v657 = vpop.permute.xlu0 %656
      %658 = vrot.lane.b32.xlu0 %v651, 88
      %v659 = vpop.permute.xlu0 %658
      %v660 = vsel %vm388, %v653, %v655
      %v661 = vsel %vm388, %v657, %v659
      %v664 = vadd.f32 %v620, %v660
      %v665 = vadd.f32 %v621, %v661
      %v666 = vlaneseq
      %v667 = vshrl.u32 %v666, 7
      %v668 = vsub.s32 5, %v667
      %v669 = vrot.slane %v226, %v668
      %671 = vrot.lane.b32.xlu0 %v669, 48
      %v672 = vpop.permute.xlu0 %671
      %v674 = vmul.f32 %v219, %v672
      %v675 = vmul.f32 %v220, %v672
      %v676 = vmul.f32 %v221, %v672
      %v677 = vmul.f32 %v222, %v672
      %v678 = vmul.f32 %v223, %v672
      %v679 = vmul.f32 %v224, %v672
      %v686 = vrot.slane %v674, 1
      %v687 = vrot.slane %v676, 1
      %v688 = vsel %vm436, %v686, %v687
      %v689 = vrot.slane %v675, 1
      %v690 = vrot.slane %v677, 1
      %v691 = vsel %vm436, %v689, %v690
      %v692 = vrot.slane %v678, 1
      %v693 = vsel %vm436, %v687, %v692
      %v694 = vrot.slane %v679, 1
      %v695 = vsel %vm436, %v690, %v694
      %696 = vrot.lane.b32.xlu0 %v688, 80
      %v697 = vpop.permute.xlu0 %696
      %698 = vrot.lane.b32.xlu0 %v691, 80
      %v699 = vpop.permute.xlu0 %698
      %700 = vrot.lane.b32.xlu0 %v693, 80
      %v701 = vpop.permute.xlu0 %700
      %702 = vrot.lane.b32.xlu0 %v695, 80
      %v703 = vpop.permute.xlu0 %702
      %v704 = vsel %vm419, %v697, %v699
      %v705 = vsel %vm419, %v701, %v703
      %v708 = vadd.f32 %v664, %v704
      %v709 = vadd.f32 %v665, %v705
      %v710 = vlaneseq
      %v711 = vshrl.u32 %v710, 7
      %v712 = vsub.s32 6, %v711
      %v713 = vrot.slane %v226, %v712
      %v714 = vmul.f32 %v219, %v713
      %v715 = vmul.f32 %v221, %v713
      %v716 = vmul.f32 %v223, %v713
      %vm720 = vcmask 1045504
      %v721 = vrot.slane %v714, 2
      %v722 = vrot.slane %v715, 2
      %v723 = vsel %vm720, %v721, %v722
      %v724 = vrot.slane %v716, 2
      %v725 = vsel %vm720, %v722, %v724
      %v728 = vadd.f32 %v708, %v723
      %v729 = vadd.f32 %v709, %v725
      %v730 = vlaneseq
      %v731 = vshrl.u32 %v730, 7
      %v732 = vsub.s32 7, %v731
      %v733 = vrot.slane %v226, %v732
      %735 = vrot.lane.b32.xlu0 %v733, 8
      %v736 = vpop.permute.xlu0 %735
      %v738 = vmul.f32 %v219, %v736
      %v739 = vmul.f32 %v220, %v736
      %v740 = vmul.f32 %v221, %v736
      %v741 = vmul.f32 %v222, %v736
      %v742 = vmul.f32 %v223, %v736
      %v743 = vmul.f32 %v224, %v736
      %v750 = vrot.slane %v738, 2
      %v751 = vrot.slane %v740, 2
      %v752 = vsel %vm720, %v750, %v751
      %v753 = vrot.slane %v739, 2
      %v754 = vrot.slane %v741, 2
      %v755 = vsel %vm720, %v753, %v754
      %v756 = vrot.slane %v742, 2
      %v757 = vsel %vm720, %v751, %v756
      %v758 = vrot.slane %v743, 2
      %v759 = vsel %vm720, %v754, %v758
      %760 = vrot.lane.b32.xlu0 %v752, 120
      %v761 = vpop.permute.xlu0 %760
      %762 = vrot.lane.b32.xlu0 %v755, 120
      %v763 = vpop.permute.xlu0 %762
      %764 = vrot.lane.b32.xlu0 %v757, 120
      %v765 = vpop.permute.xlu0 %764
      %766 = vrot.lane.b32.xlu0 %v759, 120
      %v767 = vpop.permute.xlu0 %766
      %v768 = vsel %vm264, %v761, %v763
      %v769 = vsel %vm264, %v765, %v767
      %v772 = vadd.f32 %v728, %v768
      %v773 = vadd.f32 %v729, %v769
      %v774 = vlaneseq
      %v775 = vshrl.u32 %v774, 7
      %v776 = vsub.s32 0, %v775
      %v777 = vrot.slane %v227, %v776
      %779 = vrot.lane.b32.xlu0 %v777, 16
      %v780 = vpop.permute.xlu0 %779
      %v782 = vmul.f32 %v219, %v780
      %v783 = vmul.f32 %v220, %v780
      %v784 = vmul.f32 %v221, %v780
      %v785 = vmul.f32 %v222, %v780
      %v786 = vmul.f32 %v223, %v780
      %v787 = vmul.f32 %v224, %v780
      %v794 = vrot.slane %v782, 2
      %v795 = vrot.slane %v784, 2
      %v796 = vsel %vm720, %v794, %v795
      %v797 = vrot.slane %v783, 2
      %v798 = vrot.slane %v785, 2
      %v799 = vsel %vm720, %v797, %v798
      %v800 = vrot.slane %v786, 2
      %v801 = vsel %vm720, %v795, %v800
      %v802 = vrot.slane %v787, 2
      %v803 = vsel %vm720, %v798, %v802
      %804 = vrot.lane.b32.xlu0 %v796, 112
      %v805 = vpop.permute.xlu0 %804
      %806 = vrot.lane.b32.xlu0 %v799, 112
      %v807 = vpop.permute.xlu0 %806
      %808 = vrot.lane.b32.xlu0 %v801, 112
      %v809 = vpop.permute.xlu0 %808
      %810 = vrot.lane.b32.xlu0 %v803, 112
      %v811 = vpop.permute.xlu0 %810
      %v812 = vsel %vm295, %v805, %v807
      %v813 = vsel %vm295, %v809, %v811
      %v816 = vadd.f32 %v772, %v812
      %v817 = vadd.f32 %v773, %v813
      %v818 = vlaneseq
      %v819 = vshrl.u32 %v818, 7
      %v820 = vsub.s32 1, %v819
      %v821 = vrot.slane %v227, %v820
      %823 = vrot.lane.b32.xlu0 %v821, 24
      %v824 = vpop.permute.xlu0 %823
      %v826 = vmul.f32 %v219, %v824
      %v827 = vmul.f32 %v220, %v824
      %v828 = vmul.f32 %v221, %v824
      %v829 = vmul.f32 %v222, %v824
      %v830 = vmul.f32 %v223, %v824
      %v831 = vmul.f32 %v224, %v824
      %v838 = vrot.slane %v826, 2
      %v839 = vrot.slane %v828, 2
      %v840 = vsel %vm720, %v838, %v839
      %v841 = vrot.slane %v827, 2
      %v842 = vrot.slane %v829, 2
      %v843 = vsel %vm720, %v841, %v842
      %v844 = vrot.slane %v830, 2
      %v845 = vsel %vm720, %v839, %v844
      %v846 = vrot.slane %v831, 2
      %v847 = vsel %vm720, %v842, %v846
      %848 = vrot.lane.b32.xlu0 %v840, 104
      %v849 = vpop.permute.xlu0 %848
      %850 = vrot.lane.b32.xlu0 %v843, 104
      %v851 = vpop.permute.xlu0 %850
      %852 = vrot.lane.b32.xlu0 %v845, 104
      %v853 = vpop.permute.xlu0 %852
      %854 = vrot.lane.b32.xlu0 %v847, 104
      %v855 = vpop.permute.xlu0 %854
      %v856 = vsel %vm326, %v849, %v851
      %v857 = vsel %vm326, %v853, %v855
      %v860 = vadd.f32 %v816, %v856
      %v861 = vadd.f32 %v817, %v857
      %v862 = vlaneseq
      %v863 = vshrl.u32 %v862, 7
      %v864 = vsub.s32 2, %v863
      %v865 = vrot.slane %v227, %v864
      %867 = vrot.lane.b32.xlu0 %v865, 32
      %v868 = vpop.permute.xlu0 %867
      %v870 = vmul.f32 %v219, %v868
      %v871 = vmul.f32 %v220, %v868
      %v872 = vmul.f32 %v221, %v868
      %v873 = vmul.f32 %v222, %v868
      %v874 = vmul.f32 %v223, %v868
      %v875 = vmul.f32 %v224, %v868
      %v882 = vrot.slane %v870, 2
      %v883 = vrot.slane %v872, 2
      %v884 = vsel %vm720, %v882, %v883
      %v885 = vrot.slane %v871, 2
      %v886 = vrot.slane %v873, 2
      %v887 = vsel %vm720, %v885, %v886
      %v888 = vrot.slane %v874, 2
      %v889 = vsel %vm720, %v883, %v888
      %v890 = vrot.slane %v875, 2
      %v891 = vsel %vm720, %v886, %v890
      %892 = vrot.lane.b32.xlu0 %v884, 96
      %v893 = vpop.permute.xlu0 %892
      %894 = vrot.lane.b32.xlu0 %v887, 96
      %v895 = vpop.permute.xlu0 %894
      %896 = vrot.lane.b32.xlu0 %v889, 96
      %v897 = vpop.permute.xlu0 %896
      %898 = vrot.lane.b32.xlu0 %v891, 96
      %v899 = vpop.permute.xlu0 %898
      %v900 = vsel %vm357, %v893, %v895
      %v901 = vsel %vm357, %v897, %v899
      %v904 = vadd.f32 %v860, %v900
      %v905 = vadd.f32 %v861, %v901
      %v906 = vlaneseq
      %v907 = vshrl.u32 %v906, 7
      %v908 = vsub.s32 3, %v907
      %v909 = vrot.slane %v227, %v908
      %911 = vrot.lane.b32.xlu0 %v909, 40
      %v912 = vpop.permute.xlu0 %911
      %v914 = vmul.f32 %v219, %v912
      %v915 = vmul.f32 %v220, %v912
      %v916 = vmul.f32 %v221, %v912
      %v917 = vmul.f32 %v222, %v912
      %v918 = vmul.f32 %v223, %v912
      %v919 = vmul.f32 %v224, %v912
      %v926 = vrot.slane %v914, 2
      %v927 = vrot.slane %v916, 2
      %v928 = vsel %vm720, %v926, %v927
      %v929 = vrot.slane %v915, 2
      %v930 = vrot.slane %v917, 2
      %v931 = vsel %vm720, %v929, %v930
      %v932 = vrot.slane %v918, 2
      %v933 = vsel %vm720, %v927, %v932
      %v934 = vrot.slane %v919, 2
      %v935 = vsel %vm720, %v930, %v934
      %936 = vrot.lane.b32.xlu0 %v928, 88
      %v937 = vpop.permute.xlu0 %936
      %938 = vrot.lane.b32.xlu0 %v931, 88
      %v939 = vpop.permute.xlu0 %938
      %940 = vrot.lane.b32.xlu0 %v933, 88
      %v941 = vpop.permute.xlu0 %940
      %942 = vrot.lane.b32.xlu0 %v935, 88
      %v943 = vpop.permute.xlu0 %942
      %v944 = vsel %vm388, %v937, %v939
      %v945 = vsel %vm388, %v941, %v943
      %v948 = vadd.f32 %v904, %v944
      %v949 = vadd.f32 %v905, %v945
      %v950 = vlaneseq
      %v951 = vshrl.u32 %v950, 7
      %v952 = vsub.s32 4, %v951
      %v953 = vrot.slane %v227, %v952
      %955 = vrot.lane.b32.xlu0 %v953, 48
      %v956 = vpop.permute.xlu0 %955
      %v958 = vmul.f32 %v219, %v956
      %v959 = vmul.f32 %v220, %v956
      %v960 = vmul.f32 %v221, %v956
      %v961 = vmul.f32 %v222, %v956
      %v962 = vmul.f32 %v223, %v956
      %v963 = vmul.f32 %v224, %v956
      %v970 = vrot.slane %v958, 2
      %v971 = vrot.slane %v960, 2
      %v972 = vsel %vm720, %v970, %v971
      %v973 = vrot.slane %v959, 2
      %v974 = vrot.slane %v961, 2
      %v975 = vsel %vm720, %v973, %v974
      %v976 = vrot.slane %v962, 2
      %v977 = vsel %vm720, %v971, %v976
      %v978 = vrot.slane %v963, 2
      %v979 = vsel %vm720, %v974, %v978
      %980 = vrot.lane.b32.xlu0 %v972, 80
      %v981 = vpop.permute.xlu0 %980
      %982 = vrot.lane.b32.xlu0 %v975, 80
      %v983 = vpop.permute.xlu0 %982
      %984 = vrot.lane.b32.xlu0 %v977, 80
      %v985 = vpop.permute.xlu0 %984
      %986 = vrot.lane.b32.xlu0 %v979, 80
      %v987 = vpop.permute.xlu0 %986
      %v988 = vsel %vm419, %v981, %v983
      %v989 = vsel %vm419, %v985, %v987
      %v992 = vadd.f32 %v948, %v988
      %v993 = vadd.f32 %v949, %v989
      %v994 = vlaneseq
      %v995 = vshrl.u32 %v994, 7
      %v996 = vsub.s32 5, %v995
      %v997 = vrot.slane %v227, %v996
      %v998 = vmul.f32 %v219, %v997
      %v999 = vmul.f32 %v221, %v997
      %v1000 = vmul.f32 %v223, %v997
      %vm1004 = vcmask 1044480
      %v1005 = vrot.slane %v998, 3
      %v1006 = vrot.slane %v999, 3
      %v1007 = vsel %vm1004, %v1005, %v1006
      %v1008 = vrot.slane %v1000, 3
      %v1009 = vsel %vm1004, %v1006, %v1008
      %v1012 = vadd.f32 %v992, %v1007
      %v1013 = vadd.f32 %v993, %v1009
      %v1014 = vlaneseq
      %v1015 = vshrl.u32 %v1014, 7
      %v1016 = vsub.s32 6, %v1015
      %v1017 = vrot.slane %v227, %v1016
      %1019 = vrot.lane.b32.xlu0 %v1017, 8
      %v1020 = vpop.permute.xlu0 %1019
      %v1022 = vmul.f32 %v219, %v1020
      %v1023 = vmul.f32 %v220, %v1020
      %v1024 = vmul.f32 %v221, %v1020
      %v1025 = vmul.f32 %v222, %v1020
      %v1026 = vmul.f32 %v223, %v1020
      %v1027 = vmul.f32 %v224, %v1020
      %v1034 = vrot.slane %v1022, 3
      %v1035 = vrot.slane %v1024, 3
      %v1036 = vsel %vm1004, %v1034, %v1035
      %v1037 = vrot.slane %v1023, 3
      %v1038 = vrot.slane %v1025, 3
      %v1039 = vsel %vm1004, %v1037, %v1038
      %v1040 = vrot.slane %v1026, 3
      %v1041 = vsel %vm1004, %v1035, %v1040
      %v1042 = vrot.slane %v1027, 3
      %v1043 = vsel %vm1004, %v1038, %v1042
      %1044 = vrot.lane.b32.xlu0 %v1036, 120
      %v1045 = vpop.permute.xlu0 %1044
      %1046 = vrot.lane.b32.xlu0 %v1039, 120
      %v1047 = vpop.permute.xlu0 %1046
      %1048 = vrot.lane.b32.xlu0 %v1041, 120
      %v1049 = vpop.permute.xlu0 %1048
      %1050 = vrot.lane.b32.xlu0 %v1043, 120
      %v1051 = vpop.permute.xlu0 %1050
      %v1052 = vsel %vm264, %v1045, %v1047
      %v1053 = vsel %vm264, %v1049, %v1051
      %v1056 = vadd.f32 %v1012, %v1052
      %v1057 = vadd.f32 %v1013, %v1053
      %v1058 = vlaneseq
      %v1059 = vshrl.u32 %v1058, 7
      %v1060 = vsub.s32 7, %v1059
      %v1061 = vrot.slane %v227, %v1060
      %1063 = vrot.lane.b32.xlu0 %v1061, 16
      %v1064 = vpop.permute.xlu0 %1063
      %v1066 = vmul.f32 %v219, %v1064
      %v1067 = vmul.f32 %v220, %v1064
      %v1068 = vmul.f32 %v221, %v1064
      %v1069 = vmul.f32 %v222, %v1064
      %v1070 = vmul.f32 %v223, %v1064
      %v1071 = vmul.f32 %v224, %v1064
      %v1078 = vrot.slane %v1066, 3
      %v1079 = vrot.slane %v1068, 3
      %v1080 = vsel %vm1004, %v1078, %v1079
      %v1081 = vrot.slane %v1067, 3
      %v1082 = vrot.slane %v1069, 3
      %v1083 = vsel %vm1004, %v1081, %v1082
      %v1084 = vrot.slane %v1070, 3
      %v1085 = vsel %vm1004, %v1079, %v1084
      %v1086 = vrot.slane %v1071, 3
      %v1087 = vsel %vm1004, %v1082, %v1086
      %1088 = vrot.lane.b32.xlu0 %v1080, 112
      %v1089 = vpop.permute.xlu0 %1088
      %1090 = vrot.lane.b32.xlu0 %v1083, 112
      %v1091 = vpop.permute.xlu0 %1090
      %1092 = vrot.lane.b32.xlu0 %v1085, 112
      %v1093 = vpop.permute.xlu0 %1092
      %1094 = vrot.lane.b32.xlu0 %v1087, 112
      %v1095 = vpop.permute.xlu0 %1094
      %v1096 = vsel %vm295, %v1089, %v1091
      %v1097 = vsel %vm295, %v1093, %v1095
      %v1100 = vadd.f32 %v1056, %v1096
      %v1101 = vadd.f32 %v1057, %v1097
      %v1102 = vlaneseq
      %v1103 = vshrl.u32 %v1102, 7
      %v1104 = vsub.s32 0, %v1103
      %v1105 = vrot.slane %v228, %v1104
      %1107 = vrot.lane.b32.xlu0 %v1105, 24
      %v1108 = vpop.permute.xlu0 %1107
      %v1110 = vmul.f32 %v219, %v1108
      %v1111 = vmul.f32 %v220, %v1108
      %v1112 = vmul.f32 %v221, %v1108
      %v1113 = vmul.f32 %v222, %v1108
      %v1114 = vmul.f32 %v223, %v1108
      %v1115 = vmul.f32 %v224, %v1108
      %v1122 = vrot.slane %v1110, 3
      %v1123 = vrot.slane %v1112, 3
      %v1124 = vsel %vm1004, %v1122, %v1123
      %v1125 = vrot.slane %v1111, 3
      %v1126 = vrot.slane %v1113, 3
      %v1127 = vsel %vm1004, %v1125, %v1126
      %v1128 = vrot.slane %v1114, 3
      %v1129 = vsel %vm1004, %v1123, %v1128
      %v1130 = vrot.slane %v1115, 3
      %v1131 = vsel %vm1004, %v1126, %v1130
      %1132 = vrot.lane.b32.xlu0 %v1124, 104
      %v1133 = vpop.permute.xlu0 %1132
      %1134 = vrot.lane.b32.xlu0 %v1127, 104
      %v1135 = vpop.permute.xlu0 %1134
      %1136 = vrot.lane.b32.xlu0 %v1129, 104
      %v1137 = vpop.permute.xlu0 %1136
      %1138 = vrot.lane.b32.xlu0 %v1131, 104
      %v1139 = vpop.permute.xlu0 %1138
      %v1140 = vsel %vm326, %v1133, %v1135
      %v1141 = vsel %vm326, %v1137, %v1139
      %v1144 = vadd.f32 %v1100, %v1140
      %v1145 = vadd.f32 %v1101, %v1141
      %v1146 = vlaneseq
      %v1147 = vshrl.u32 %v1146, 7
      %v1148 = vsub.s32 1, %v1147
      %v1149 = vrot.slane %v228, %v1148
      %1151 = vrot.lane.b32.xlu0 %v1149, 32
      %v1152 = vpop.permute.xlu0 %1151
      %v1154 = vmul.f32 %v219, %v1152
      %v1155 = vmul.f32 %v220, %v1152
      %v1156 = vmul.f32 %v221, %v1152
      %v1157 = vmul.f32 %v222, %v1152
      %v1158 = vmul.f32 %v223, %v1152
      %v1159 = vmul.f32 %v224, %v1152
      %v1166 = vrot.slane %v1154, 3
      %v1167 = vrot.slane %v1156, 3
      %v1168 = vsel %vm1004, %v1166, %v1167
      %v1169 = vrot.slane %v1155, 3
      %v1170 = vrot.slane %v1157, 3
      %v1171 = vsel %vm1004, %v1169, %v1170
      %v1172 = vrot.slane %v1158, 3
      %v1173 = vsel %vm1004, %v1167, %v1172
      %v1174 = vrot.slane %v1159, 3
      %v1175 = vsel %vm1004, %v1170, %v1174
      %1176 = vrot.lane.b32.xlu0 %v1168, 96
      %v1177 = vpop.permute.xlu0 %1176
      %1178 = vrot.lane.b32.xlu0 %v1171, 96
      %v1179 = vpop.permute.xlu0 %1178
      %1180 = vrot.lane.b32.xlu0 %v1173, 96
      %v1181 = vpop.permute.xlu0 %1180
      %1182 = vrot.lane.b32.xlu0 %v1175, 96
      %v1183 = vpop.permute.xlu0 %1182
      %v1184 = vsel %vm357, %v1177, %v1179
      %v1185 = vsel %vm357, %v1181, %v1183
      %v1188 = vadd.f32 %v1144, %v1184
      %v1189 = vadd.f32 %v1145, %v1185
      %v1190 = vlaneseq
      %v1191 = vshrl.u32 %v1190, 7
      %v1192 = vsub.s32 2, %v1191
      %v1193 = vrot.slane %v228, %v1192
      %1195 = vrot.lane.b32.xlu0 %v1193, 40
      %v1196 = vpop.permute.xlu0 %1195
      %v1198 = vmul.f32 %v219, %v1196
      %v1199 = vmul.f32 %v220, %v1196
      %v1200 = vmul.f32 %v221, %v1196
      %v1201 = vmul.f32 %v222, %v1196
      %v1202 = vmul.f32 %v223, %v1196
      %v1203 = vmul.f32 %v224, %v1196
      %v1210 = vrot.slane %v1198, 3
      %v1211 = vrot.slane %v1200, 3
      %v1212 = vsel %vm1004, %v1210, %v1211
      %v1213 = vrot.slane %v1199, 3
      %v1214 = vrot.slane %v1201, 3
      %v1215 = vsel %vm1004, %v1213, %v1214
      %v1216 = vrot.slane %v1202, 3
      %v1217 = vsel %vm1004, %v1211, %v1216
      %v1218 = vrot.slane %v1203, 3
      %v1219 = vsel %vm1004, %v1214, %v1218
      %1220 = vrot.lane.b32.xlu0 %v1212, 88
      %v1221 = vpop.permute.xlu0 %1220
      %1222 = vrot.lane.b32.xlu0 %v1215, 88
      %v1223 = vpop.permute.xlu0 %1222
      %1224 = vrot.lane.b32.xlu0 %v1217, 88
      %v1225 = vpop.permute.xlu0 %1224
      %1226 = vrot.lane.b32.xlu0 %v1219, 88
      %v1227 = vpop.permute.xlu0 %1226
      %v1228 = vsel %vm388, %v1221, %v1223
      %v1229 = vsel %vm388, %v1225, %v1227
      %v1232 = vadd.f32 %v1188, %v1228
      %v1233 = vadd.f32 %v1189, %v1229
      %v1234 = vlaneseq
      %v1235 = vshrl.u32 %v1234, 7
      %v1236 = vsub.s32 3, %v1235
      %v1237 = vrot.slane %v228, %v1236
      %1239 = vrot.lane.b32.xlu0 %v1237, 48
      %v1240 = vpop.permute.xlu0 %1239
      %v1242 = vmul.f32 %v219, %v1240
      %v1243 = vmul.f32 %v220, %v1240
      %v1244 = vmul.f32 %v221, %v1240
      %v1245 = vmul.f32 %v222, %v1240
      %v1246 = vmul.f32 %v223, %v1240
      %v1247 = vmul.f32 %v224, %v1240
      %v1254 = vrot.slane %v1242, 3
      %v1255 = vrot.slane %v1244, 3
      %v1256 = vsel %vm1004, %v1254, %v1255
      %v1257 = vrot.slane %v1243, 3
      %v1258 = vrot.slane %v1245, 3
      %v1259 = vsel %vm1004, %v1257, %v1258
      %v1260 = vrot.slane %v1246, 3
      %v1261 = vsel %vm1004, %v1255, %v1260
      %v1262 = vrot.slane %v1247, 3
      %v1263 = vsel %vm1004, %v1258, %v1262
      %1264 = vrot.lane.b32.xlu0 %v1256, 80
      %v1265 = vpop.permute.xlu0 %1264
      %1266 = vrot.lane.b32.xlu0 %v1259, 80
      %v1267 = vpop.permute.xlu0 %1266
      %1268 = vrot.lane.b32.xlu0 %v1261, 80
      %v1269 = vpop.permute.xlu0 %1268
      %1270 = vrot.lane.b32.xlu0 %v1263, 80
      %v1271 = vpop.permute.xlu0 %1270
      %v1272 = vsel %vm419, %v1265, %v1267
      %v1273 = vsel %vm419, %v1269, %v1271
      %v1276 = vadd.f32 %v1232, %v1272
      %v1277 = vadd.f32 %v1233, %v1273
      %v1278 = vlaneseq
      %v1279 = vshrl.u32 %v1278, 7
      %v1280 = vsub.s32 4, %v1279
      %v1281 = vrot.slane %v228, %v1280
      %v1282 = vmul.f32 %v219, %v1281
      %v1283 = vmul.f32 %v221, %v1281
      %v1284 = vmul.f32 %v223, %v1281
      %vm1288 = vcmask 1043456
      %v1289 = vrot.slane %v1282, 4
      %v1290 = vrot.slane %v1283, 4
      %v1291 = vsel %vm1288, %v1289, %v1290
      %v1292 = vrot.slane %v1284, 4
      %v1293 = vsel %vm1288, %v1290, %v1292
      %v1296 = vadd.f32 %v1276, %v1291
      %v1297 = vadd.f32 %v1277, %v1293
      %v1298 = vlaneseq
      %v1299 = vshrl.u32 %v1298, 7
      %v1300 = vsub.s32 5, %v1299
      %v1301 = vrot.slane %v228, %v1300
      %1303 = vrot.lane.b32.xlu0 %v1301, 8
      %v1304 = vpop.permute.xlu0 %1303
      %v1306 = vmul.f32 %v219, %v1304
      %v1307 = vmul.f32 %v220, %v1304
      %v1308 = vmul.f32 %v221, %v1304
      %v1309 = vmul.f32 %v222, %v1304
      %v1310 = vmul.f32 %v223, %v1304
      %v1311 = vmul.f32 %v224, %v1304
      %v1318 = vrot.slane %v1306, 4
      %v1319 = vrot.slane %v1308, 4
      %v1320 = vsel %vm1288, %v1318, %v1319
      %v1321 = vrot.slane %v1307, 4
      %v1322 = vrot.slane %v1309, 4
      %v1323 = vsel %vm1288, %v1321, %v1322
      %v1324 = vrot.slane %v1310, 4
      %v1325 = vsel %vm1288, %v1319, %v1324
      %v1326 = vrot.slane %v1311, 4
      %v1327 = vsel %vm1288, %v1322, %v1326
      %1328 = vrot.lane.b32.xlu0 %v1320, 120
      %v1329 = vpop.permute.xlu0 %1328
      %1330 = vrot.lane.b32.xlu0 %v1323, 120
      %v1331 = vpop.permute.xlu0 %1330
      %1332 = vrot.lane.b32.xlu0 %v1325, 120
      %v1333 = vpop.permute.xlu0 %1332
      %1334 = vrot.lane.b32.xlu0 %v1327, 120
      %v1335 = vpop.permute.xlu0 %1334
      %v1336 = vsel %vm264, %v1329, %v1331
      %v1337 = vsel %vm264, %v1333, %v1335
      %v1340 = vadd.f32 %v1296, %v1336
      %v1341 = vadd.f32 %v1297, %v1337
      %v1342 = vlaneseq
      %v1343 = vshrl.u32 %v1342, 7
      %v1344 = vsub.s32 6, %v1343
      %v1345 = vrot.slane %v228, %v1344
      %1347 = vrot.lane.b32.xlu0 %v1345, 16
      %v1348 = vpop.permute.xlu0 %1347
      %v1350 = vmul.f32 %v219, %v1348
      %v1351 = vmul.f32 %v220, %v1348
      %v1352 = vmul.f32 %v221, %v1348
      %v1353 = vmul.f32 %v222, %v1348
      %v1354 = vmul.f32 %v223, %v1348
      %v1355 = vmul.f32 %v224, %v1348
      %v1362 = vrot.slane %v1350, 4
      %v1363 = vrot.slane %v1352, 4
      %v1364 = vsel %vm1288, %v1362, %v1363
      %v1365 = vrot.slane %v1351, 4
      %v1366 = vrot.slane %v1353, 4
      %v1367 = vsel %vm1288, %v1365, %v1366
      %v1368 = vrot.slane %v1354, 4
      %v1369 = vsel %vm1288, %v1363, %v1368
      %v1370 = vrot.slane %v1355, 4
      %v1371 = vsel %vm1288, %v1366, %v1370
      %1372 = vrot.lane.b32.xlu0 %v1364, 112
      %v1373 = vpop.permute.xlu0 %1372
      %1374 = vrot.lane.b32.xlu0 %v1367, 112
      %v1375 = vpop.permute.xlu0 %1374
      %1376 = vrot.lane.b32.xlu0 %v1369, 112
      %v1377 = vpop.permute.xlu0 %1376
      %1378 = vrot.lane.b32.xlu0 %v1371, 112
      %v1379 = vpop.permute.xlu0 %1378
      %v1380 = vsel %vm295, %v1373, %v1375
      %v1381 = vsel %vm295, %v1377, %v1379
      %v1384 = vadd.f32 %v1340, %v1380
      %v1385 = vadd.f32 %v1341, %v1381
      %v1386 = vlaneseq
      %v1387 = vshrl.u32 %v1386, 7
      %v1388 = vsub.s32 7, %v1387
      %v1389 = vrot.slane %v228, %v1388
      %1391 = vrot.lane.b32.xlu0 %v1389, 24
      %v1392 = vpop.permute.xlu0 %1391
      %v1394 = vmul.f32 %v219, %v1392
      %v1395 = vmul.f32 %v220, %v1392
      %v1396 = vmul.f32 %v221, %v1392
      %v1397 = vmul.f32 %v222, %v1392
      %v1398 = vmul.f32 %v223, %v1392
      %v1399 = vmul.f32 %v224, %v1392
      %v1406 = vrot.slane %v1394, 4
      %v1407 = vrot.slane %v1396, 4
      %v1408 = vsel %vm1288, %v1406, %v1407
      %v1409 = vrot.slane %v1395, 4
      %v1410 = vrot.slane %v1397, 4
      %v1411 = vsel %vm1288, %v1409, %v1410
      %v1412 = vrot.slane %v1398, 4
      %v1413 = vsel %vm1288, %v1407, %v1412
      %v1414 = vrot.slane %v1399, 4
      %v1415 = vsel %vm1288, %v1410, %v1414
      %1416 = vrot.lane.b32.xlu0 %v1408, 104
      %v1417 = vpop.permute.xlu0 %1416
      %1418 = vrot.lane.b32.xlu0 %v1411, 104
      %v1419 = vpop.permute.xlu0 %1418
      %1420 = vrot.lane.b32.xlu0 %v1413, 104
      %v1421 = vpop.permute.xlu0 %1420
      %1422 = vrot.lane.b32.xlu0 %v1415, 104
      %v1423 = vpop.permute.xlu0 %1422
      %v1424 = vsel %vm326, %v1417, %v1419
      %v1425 = vsel %vm326, %v1421, %v1423
      %v1428 = vadd.f32 %v1384, %v1424
      %v1429 = vadd.f32 %v1385, %v1425
      %v1430 = vlaneseq
      %v1431 = vshrl.u32 %v1430, 7
      %v1432 = vsub.s32 0, %v1431
      %v1433 = vrot.slane %v229, %v1432
      %1435 = vrot.lane.b32.xlu0 %v1433, 32
      %v1436 = vpop.permute.xlu0 %1435
      %v1438 = vmul.f32 %v219, %v1436
      %v1439 = vmul.f32 %v220, %v1436
      %v1440 = vmul.f32 %v221, %v1436
      %v1441 = vmul.f32 %v222, %v1436
      %v1442 = vmul.f32 %v223, %v1436
      %v1443 = vmul.f32 %v224, %v1436
      %v1450 = vrot.slane %v1438, 4
      %v1451 = vrot.slane %v1440, 4
      %v1452 = vsel %vm1288, %v1450, %v1451
      %v1453 = vrot.slane %v1439, 4
      %v1454 = vrot.slane %v1441, 4
      %v1455 = vsel %vm1288, %v1453, %v1454
      %v1456 = vrot.slane %v1442, 4
      %v1457 = vsel %vm1288, %v1451, %v1456
      %v1458 = vrot.slane %v1443, 4
      %v1459 = vsel %vm1288, %v1454, %v1458
      %1460 = vrot.lane.b32.xlu0 %v1452, 96
      %v1461 = vpop.permute.xlu0 %1460
      %1462 = vrot.lane.b32.xlu0 %v1455, 96
      %v1463 = vpop.permute.xlu0 %1462
      %1464 = vrot.lane.b32.xlu0 %v1457, 96
      %v1465 = vpop.permute.xlu0 %1464
      %1466 = vrot.lane.b32.xlu0 %v1459, 96
      %v1467 = vpop.permute.xlu0 %1466
      %v1468 = vsel %vm357, %v1461, %v1463
      %v1469 = vsel %vm357, %v1465, %v1467
      %v1472 = vadd.f32 %v1428, %v1468
      %v1473 = vadd.f32 %v1429, %v1469
      %v1474 = vlaneseq
      %v1475 = vshrl.u32 %v1474, 7
      %v1476 = vsub.s32 1, %v1475
      %v1477 = vrot.slane %v229, %v1476
      %1479 = vrot.lane.b32.xlu0 %v1477, 40
      %v1480 = vpop.permute.xlu0 %1479
      %v1482 = vmul.f32 %v219, %v1480
      %v1483 = vmul.f32 %v220, %v1480
      %v1484 = vmul.f32 %v221, %v1480
      %v1485 = vmul.f32 %v222, %v1480
      %v1486 = vmul.f32 %v223, %v1480
      %v1487 = vmul.f32 %v224, %v1480
      %v1494 = vrot.slane %v1482, 4
      %v1495 = vrot.slane %v1484, 4
      %v1496 = vsel %vm1288, %v1494, %v1495
      %v1497 = vrot.slane %v1483, 4
      %v1498 = vrot.slane %v1485, 4
      %v1499 = vsel %vm1288, %v1497, %v1498
      %v1500 = vrot.slane %v1486, 4
      %v1501 = vsel %vm1288, %v1495, %v1500
      %v1502 = vrot.slane %v1487, 4
      %v1503 = vsel %vm1288, %v1498, %v1502
      %1504 = vrot.lane.b32.xlu0 %v1496, 88
      %v1505 = vpop.permute.xlu0 %1504
      %1506 = vrot.lane.b32.xlu0 %v1499, 88
      %v1507 = vpop.permute.xlu0 %1506
      %1508 = vrot.lane.b32.xlu0 %v1501, 88
      %v1509 = vpop.permute.xlu0 %1508
      %1510 = vrot.lane.b32.xlu0 %v1503, 88
      %v1511 = vpop.permute.xlu0 %1510
      %v1512 = vsel %vm388, %v1505, %v1507
      %v1513 = vsel %vm388, %v1509, %v1511
      %v1516 = vadd.f32 %v1472, %v1512
      %v1517 = vadd.f32 %v1473, %v1513
      %v1518 = vlaneseq
      %v1519 = vshrl.u32 %v1518, 7
      %v1520 = vsub.s32 2, %v1519
      %v1521 = vrot.slane %v229, %v1520
      %1523 = vrot.lane.b32.xlu0 %v1521, 48
      %v1524 = vpop.permute.xlu0 %1523
      %v1526 = vmul.f32 %v219, %v1524
      %v1527 = vmul.f32 %v220, %v1524
      %v1528 = vmul.f32 %v221, %v1524
      %v1529 = vmul.f32 %v222, %v1524
      %v1530 = vmul.f32 %v223, %v1524
      %v1531 = vmul.f32 %v224, %v1524
      %v1538 = vrot.slane %v1526, 4
      %v1539 = vrot.slane %v1528, 4
      %v1540 = vsel %vm1288, %v1538, %v1539
      %v1541 = vrot.slane %v1527, 4
      %v1542 = vrot.slane %v1529, 4
      %v1543 = vsel %vm1288, %v1541, %v1542
      %v1544 = vrot.slane %v1530, 4
      %v1545 = vsel %vm1288, %v1539, %v1544
      %v1546 = vrot.slane %v1531, 4
      %v1547 = vsel %vm1288, %v1542, %v1546
      %1548 = vrot.lane.b32.xlu0 %v1540, 80
      %v1549 = vpop.permute.xlu0 %1548
      %1550 = vrot.lane.b32.xlu0 %v1543, 80
      %v1551 = vpop.permute.xlu0 %1550
      %1552 = vrot.lane.b32.xlu0 %v1545, 80
      %v1553 = vpop.permute.xlu0 %1552
      %1554 = vrot.lane.b32.xlu0 %v1547, 80
      %v1555 = vpop.permute.xlu0 %1554
      %v1556 = vsel %vm419, %v1549, %v1551
      %v1557 = vsel %vm419, %v1553, %v1555
      %v1560 = vadd.f32 %v1516, %v1556
      %v1561 = vadd.f32 %v1517, %v1557
      %v1562 = vlaneseq
      %v1563 = vshrl.u32 %v1562, 7
      %v1564 = vsub.s32 3, %v1563
      %v1565 = vrot.slane %v229, %v1564
      %v1566 = vmul.f32 %v219, %v1565
      %v1567 = vmul.f32 %v221, %v1565
      %v1568 = vmul.f32 %v223, %v1565
      %v1572 = vrot.slane %v1566, 5
      %v1573 = vrot.slane %v1567, 5
      %v1574 = vsel %vm194, %v1572, %v1573
      %v1575 = vrot.slane %v1568, 5
      %v1576 = vsel %vm194, %v1573, %v1575
      %v1579 = vadd.f32 %v1560, %v1574
      %v1580 = vadd.f32 %v1561, %v1576
      %v1581 = vlaneseq
      %v1582 = vshrl.u32 %v1581, 7
      %v1583 = vsub.s32 4, %v1582
      %v1584 = vrot.slane %v229, %v1583
      %1586 = vrot.lane.b32.xlu0 %v1584, 8
      %v1587 = vpop.permute.xlu0 %1586
      %v1589 = vmul.f32 %v219, %v1587
      %v1590 = vmul.f32 %v220, %v1587
      %v1591 = vmul.f32 %v221, %v1587
      %v1592 = vmul.f32 %v222, %v1587
      %v1593 = vmul.f32 %v223, %v1587
      %v1594 = vmul.f32 %v224, %v1587
      %v1601 = vrot.slane %v1589, 5
      %v1602 = vrot.slane %v1591, 5
      %v1603 = vsel %vm194, %v1601, %v1602
      %v1604 = vrot.slane %v1590, 5
      %v1605 = vrot.slane %v1592, 5
      %v1606 = vsel %vm194, %v1604, %v1605
      %v1607 = vrot.slane %v1593, 5
      %v1608 = vsel %vm194, %v1602, %v1607
      %v1609 = vrot.slane %v1594, 5
      %v1610 = vsel %vm194, %v1605, %v1609
      %1611 = vrot.lane.b32.xlu0 %v1603, 120
      %v1612 = vpop.permute.xlu0 %1611
      %1613 = vrot.lane.b32.xlu0 %v1606, 120
      %v1614 = vpop.permute.xlu0 %1613
      %1615 = vrot.lane.b32.xlu0 %v1608, 120
      %v1616 = vpop.permute.xlu0 %1615
      %1617 = vrot.lane.b32.xlu0 %v1610, 120
      %v1618 = vpop.permute.xlu0 %1617
      %v1619 = vsel %vm264, %v1612, %v1614
      %v1620 = vsel %vm264, %v1616, %v1618
      %v1623 = vadd.f32 %v1579, %v1619
      %v1624 = vadd.f32 %v1580, %v1620
      %v1625 = vlaneseq
      %v1626 = vshrl.u32 %v1625, 7
      %v1627 = vsub.s32 5, %v1626
      %v1628 = vrot.slane %v229, %v1627
      %1630 = vrot.lane.b32.xlu0 %v1628, 16
      %v1631 = vpop.permute.xlu0 %1630
      %v1633 = vmul.f32 %v219, %v1631
      %v1634 = vmul.f32 %v220, %v1631
      %v1635 = vmul.f32 %v221, %v1631
      %v1636 = vmul.f32 %v222, %v1631
      %v1637 = vmul.f32 %v223, %v1631
      %v1638 = vmul.f32 %v224, %v1631
      %v1645 = vrot.slane %v1633, 5
      %v1646 = vrot.slane %v1635, 5
      %v1647 = vsel %vm194, %v1645, %v1646
      %v1648 = vrot.slane %v1634, 5
      %v1649 = vrot.slane %v1636, 5
      %v1650 = vsel %vm194, %v1648, %v1649
      %v1651 = vrot.slane %v1637, 5
      %v1652 = vsel %vm194, %v1646, %v1651
      %v1653 = vrot.slane %v1638, 5
      %v1654 = vsel %vm194, %v1649, %v1653
      %1655 = vrot.lane.b32.xlu0 %v1647, 112
      %v1656 = vpop.permute.xlu0 %1655
      %1657 = vrot.lane.b32.xlu0 %v1650, 112
      %v1658 = vpop.permute.xlu0 %1657
      %1659 = vrot.lane.b32.xlu0 %v1652, 112
      %v1660 = vpop.permute.xlu0 %1659
      %1661 = vrot.lane.b32.xlu0 %v1654, 112
      %v1662 = vpop.permute.xlu0 %1661
      %v1663 = vsel %vm295, %v1656, %v1658
      %v1664 = vsel %vm295, %v1660, %v1662
      %v1667 = vadd.f32 %v1623, %v1663
      %v1668 = vadd.f32 %v1624, %v1664
      %v1669 = vlaneseq
      %v1670 = vshrl.u32 %v1669, 7
      %v1671 = vsub.s32 6, %v1670
      %v1672 = vrot.slane %v229, %v1671
      %1674 = vrot.lane.b32.xlu0 %v1672, 24
      %v1675 = vpop.permute.xlu0 %1674
      %v1677 = vmul.f32 %v219, %v1675
      %v1678 = vmul.f32 %v220, %v1675
      %v1679 = vmul.f32 %v221, %v1675
      %v1680 = vmul.f32 %v222, %v1675
      %v1681 = vmul.f32 %v223, %v1675
      %v1682 = vmul.f32 %v224, %v1675
      %v1689 = vrot.slane %v1677, 5
      %v1690 = vrot.slane %v1679, 5
      %v1691 = vsel %vm194, %v1689, %v1690
      %v1692 = vrot.slane %v1678, 5
      %v1693 = vrot.slane %v1680, 5
      %v1694 = vsel %vm194, %v1692, %v1693
      %v1695 = vrot.slane %v1681, 5
      %v1696 = vsel %vm194, %v1690, %v1695
      %v1697 = vrot.slane %v1682, 5
      %v1698 = vsel %vm194, %v1693, %v1697
      %1699 = vrot.lane.b32.xlu0 %v1691, 104
      %v1700 = vpop.permute.xlu0 %1699
      %1701 = vrot.lane.b32.xlu0 %v1694, 104
      %v1702 = vpop.permute.xlu0 %1701
      %1703 = vrot.lane.b32.xlu0 %v1696, 104
      %v1704 = vpop.permute.xlu0 %1703
      %1705 = vrot.lane.b32.xlu0 %v1698, 104
      %v1706 = vpop.permute.xlu0 %1705
      %v1707 = vsel %vm326, %v1700, %v1702
      %v1708 = vsel %vm326, %v1704, %v1706
      %v1711 = vadd.f32 %v1667, %v1707
      %v1712 = vadd.f32 %v1668, %v1708
      %v1713 = vlaneseq
      %v1714 = vshrl.u32 %v1713, 7
      %v1715 = vsub.s32 7, %v1714
      %v1716 = vrot.slane %v229, %v1715
      %1718 = vrot.lane.b32.xlu0 %v1716, 32
      %v1719 = vpop.permute.xlu0 %1718
      %v1721 = vmul.f32 %v219, %v1719
      %v1722 = vmul.f32 %v220, %v1719
      %v1723 = vmul.f32 %v221, %v1719
      %v1724 = vmul.f32 %v222, %v1719
      %v1725 = vmul.f32 %v223, %v1719
      %v1726 = vmul.f32 %v224, %v1719
      %v1733 = vrot.slane %v1721, 5
      %v1734 = vrot.slane %v1723, 5
      %v1735 = vsel %vm194, %v1733, %v1734
      %v1736 = vrot.slane %v1722, 5
      %v1737 = vrot.slane %v1724, 5
      %v1738 = vsel %vm194, %v1736, %v1737
      %v1739 = vrot.slane %v1725, 5
      %v1740 = vsel %vm194, %v1734, %v1739
      %v1741 = vrot.slane %v1726, 5
      %v1742 = vsel %vm194, %v1737, %v1741
      %1743 = vrot.lane.b32.xlu0 %v1735, 96
      %v1744 = vpop.permute.xlu0 %1743
      %1745 = vrot.lane.b32.xlu0 %v1738, 96
      %v1746 = vpop.permute.xlu0 %1745
      %1747 = vrot.lane.b32.xlu0 %v1740, 96
      %v1748 = vpop.permute.xlu0 %1747
      %1749 = vrot.lane.b32.xlu0 %v1742, 96
      %v1750 = vpop.permute.xlu0 %1749
      %v1751 = vsel %vm357, %v1744, %v1746
      %v1752 = vsel %vm357, %v1748, %v1750
      %v1755 = vadd.f32 %v1711, %v1751
      %v1756 = vadd.f32 %v1712, %v1752
      %v1757 = vlaneseq
      %v1758 = vshrl.u32 %v1757, 7
      %v1759 = vsub.s32 0, %v1758
      %v1760 = vrot.slane %v230, %v1759
      %1762 = vrot.lane.b32.xlu0 %v1760, 40
      %v1763 = vpop.permute.xlu0 %1762
      %v1765 = vmul.f32 %v219, %v1763
      %v1766 = vmul.f32 %v220, %v1763
      %v1767 = vmul.f32 %v221, %v1763
      %v1768 = vmul.f32 %v222, %v1763
      %v1769 = vmul.f32 %v223, %v1763
      %v1770 = vmul.f32 %v224, %v1763
      %v1777 = vrot.slane %v1765, 5
      %v1778 = vrot.slane %v1767, 5
      %v1779 = vsel %vm194, %v1777, %v1778
      %v1780 = vrot.slane %v1766, 5
      %v1781 = vrot.slane %v1768, 5
      %v1782 = vsel %vm194, %v1780, %v1781
      %v1783 = vrot.slane %v1769, 5
      %v1784 = vsel %vm194, %v1778, %v1783
      %v1785 = vrot.slane %v1770, 5
      %v1786 = vsel %vm194, %v1781, %v1785
      %1787 = vrot.lane.b32.xlu0 %v1779, 88
      %v1788 = vpop.permute.xlu0 %1787
      %1789 = vrot.lane.b32.xlu0 %v1782, 88
      %v1790 = vpop.permute.xlu0 %1789
      %1791 = vrot.lane.b32.xlu0 %v1784, 88
      %v1792 = vpop.permute.xlu0 %1791
      %1793 = vrot.lane.b32.xlu0 %v1786, 88
      %v1794 = vpop.permute.xlu0 %1793
      %v1795 = vsel %vm388, %v1788, %v1790
      %v1796 = vsel %vm388, %v1792, %v1794
      %v1799 = vadd.f32 %v1755, %v1795
      %v1800 = vadd.f32 %v1756, %v1796
      %v1801 = vlaneseq
      %v1802 = vshrl.u32 %v1801, 7
      %v1803 = vsub.s32 1, %v1802
      %v1804 = vrot.slane %v230, %v1803
      %1806 = vrot.lane.b32.xlu0 %v1804, 48
      %v1807 = vpop.permute.xlu0 %1806
      %v1809 = vmul.f32 %v219, %v1807
      %v1810 = vmul.f32 %v220, %v1807
      %v1811 = vmul.f32 %v221, %v1807
      %v1812 = vmul.f32 %v222, %v1807
      %v1813 = vmul.f32 %v223, %v1807
      %v1814 = vmul.f32 %v224, %v1807
      %v1821 = vrot.slane %v1809, 5
      %v1822 = vrot.slane %v1811, 5
      %v1823 = vsel %vm194, %v1821, %v1822
      %v1824 = vrot.slane %v1810, 5
      %v1825 = vrot.slane %v1812, 5
      %v1826 = vsel %vm194, %v1824, %v1825
      %v1827 = vrot.slane %v1813, 5
      %v1828 = vsel %vm194, %v1822, %v1827
      %v1829 = vrot.slane %v1814, 5
      %v1830 = vsel %vm194, %v1825, %v1829
      %1831 = vrot.lane.b32.xlu0 %v1823, 80
      %v1832 = vpop.permute.xlu0 %1831
      %1833 = vrot.lane.b32.xlu0 %v1826, 80
      %v1834 = vpop.permute.xlu0 %1833
      %1835 = vrot.lane.b32.xlu0 %v1828, 80
      %v1836 = vpop.permute.xlu0 %1835
      %1837 = vrot.lane.b32.xlu0 %v1830, 80
      %v1838 = vpop.permute.xlu0 %1837
      %v1839 = vsel %vm419, %v1832, %v1834
      %v1840 = vsel %vm419, %v1836, %v1838
      %v1843 = vadd.f32 %v1799, %v1839
      %v1844 = vadd.f32 %v1800, %v1840
      %v1845 = vlaneseq
      %v1846 = vshrl.u32 %v1845, 7
      %v1847 = vsub.s32 2, %v1846
      %v1848 = vrot.slane %v230, %v1847
      %v1849 = vmul.f32 %v219, %v1848
      %v1850 = vmul.f32 %v221, %v1848
      %v1851 = vmul.f32 %v223, %v1848
      %vm1855 = vcmask 1041408
      %v1856 = vrot.slane %v1849, 6
      %v1857 = vrot.slane %v1850, 6
      %v1858 = vsel %vm1855, %v1856, %v1857
      %v1859 = vrot.slane %v1851, 6
      %v1860 = vsel %vm1855, %v1857, %v1859
      %v1863 = vadd.f32 %v1843, %v1858
      %v1864 = vadd.f32 %v1844, %v1860
      %v1865 = vlaneseq
      %v1866 = vshrl.u32 %v1865, 7
      %v1867 = vsub.s32 3, %v1866
      %v1868 = vrot.slane %v230, %v1867
      %1870 = vrot.lane.b32.xlu0 %v1868, 8
      %v1871 = vpop.permute.xlu0 %1870
      %v1873 = vmul.f32 %v219, %v1871
      %v1874 = vmul.f32 %v220, %v1871
      %v1875 = vmul.f32 %v221, %v1871
      %v1876 = vmul.f32 %v222, %v1871
      %v1877 = vmul.f32 %v223, %v1871
      %v1878 = vmul.f32 %v224, %v1871
      %v1885 = vrot.slane %v1873, 6
      %v1886 = vrot.slane %v1875, 6
      %v1887 = vsel %vm1855, %v1885, %v1886
      %v1888 = vrot.slane %v1874, 6
      %v1889 = vrot.slane %v1876, 6
      %v1890 = vsel %vm1855, %v1888, %v1889
      %v1891 = vrot.slane %v1877, 6
      %v1892 = vsel %vm1855, %v1886, %v1891
      %v1893 = vrot.slane %v1878, 6
      %v1894 = vsel %vm1855, %v1889, %v1893
      %1895 = vrot.lane.b32.xlu0 %v1887, 120
      %v1896 = vpop.permute.xlu0 %1895
      %1897 = vrot.lane.b32.xlu0 %v1890, 120
      %v1898 = vpop.permute.xlu0 %1897
      %1899 = vrot.lane.b32.xlu0 %v1892, 120
      %v1900 = vpop.permute.xlu0 %1899
      %1901 = vrot.lane.b32.xlu0 %v1894, 120
      %v1902 = vpop.permute.xlu0 %1901
      %v1903 = vsel %vm264, %v1896, %v1898
      %v1904 = vsel %vm264, %v1900, %v1902
      %v1907 = vadd.f32 %v1863, %v1903
      %v1908 = vadd.f32 %v1864, %v1904
      %v1909 = vlaneseq
      %v1910 = vshrl.u32 %v1909, 7
      %v1911 = vsub.s32 4, %v1910
      %v1912 = vrot.slane %v230, %v1911
      %1914 = vrot.lane.b32.xlu0 %v1912, 16
      %v1915 = vpop.permute.xlu0 %1914
      %v1917 = vmul.f32 %v219, %v1915
      %v1918 = vmul.f32 %v220, %v1915
      %v1919 = vmul.f32 %v221, %v1915
      %v1920 = vmul.f32 %v222, %v1915
      %v1921 = vmul.f32 %v223, %v1915
      %v1922 = vmul.f32 %v224, %v1915
      %v1929 = vrot.slane %v1917, 6
      %v1930 = vrot.slane %v1919, 6
      %v1931 = vsel %vm1855, %v1929, %v1930
      %v1932 = vrot.slane %v1918, 6
      %v1933 = vrot.slane %v1920, 6
      %v1934 = vsel %vm1855, %v1932, %v1933
      %v1935 = vrot.slane %v1921, 6
      %v1936 = vsel %vm1855, %v1930, %v1935
      %v1937 = vrot.slane %v1922, 6
      %v1938 = vsel %vm1855, %v1933, %v1937
      %1939 = vrot.lane.b32.xlu0 %v1931, 112
      %v1940 = vpop.permute.xlu0 %1939
      %1941 = vrot.lane.b32.xlu0 %v1934, 112
      %v1942 = vpop.permute.xlu0 %1941
      %1943 = vrot.lane.b32.xlu0 %v1936, 112
      %v1944 = vpop.permute.xlu0 %1943
      %1945 = vrot.lane.b32.xlu0 %v1938, 112
      %v1946 = vpop.permute.xlu0 %1945
      %v1947 = vsel %vm295, %v1940, %v1942
      %v1948 = vsel %vm295, %v1944, %v1946
      %v1951 = vadd.f32 %v1907, %v1947
      %v1952 = vadd.f32 %v1908, %v1948
      %v1953 = vlaneseq
      %v1954 = vshrl.u32 %v1953, 7
      %v1955 = vsub.s32 5, %v1954
      %v1956 = vrot.slane %v230, %v1955
      %1958 = vrot.lane.b32.xlu0 %v1956, 24
      %v1959 = vpop.permute.xlu0 %1958
      %v1961 = vmul.f32 %v219, %v1959
      %v1962 = vmul.f32 %v220, %v1959
      %v1963 = vmul.f32 %v221, %v1959
      %v1964 = vmul.f32 %v222, %v1959
      %v1965 = vmul.f32 %v223, %v1959
      %v1966 = vmul.f32 %v224, %v1959
      %v1973 = vrot.slane %v1961, 6
      %v1974 = vrot.slane %v1963, 6
      %v1975 = vsel %vm1855, %v1973, %v1974
      %v1976 = vrot.slane %v1962, 6
      %v1977 = vrot.slane %v1964, 6
      %v1978 = vsel %vm1855, %v1976, %v1977
      %v1979 = vrot.slane %v1965, 6
      %v1980 = vsel %vm1855, %v1974, %v1979
      %v1981 = vrot.slane %v1966, 6
      %v1982 = vsel %vm1855, %v1977, %v1981
      %1983 = vrot.lane.b32.xlu0 %v1975, 104
      %v1984 = vpop.permute.xlu0 %1983
      %1985 = vrot.lane.b32.xlu0 %v1978, 104
      %v1986 = vpop.permute.xlu0 %1985
      %1987 = vrot.lane.b32.xlu0 %v1980, 104
      %v1988 = vpop.permute.xlu0 %1987
      %1989 = vrot.lane.b32.xlu0 %v1982, 104
      %v1990 = vpop.permute.xlu0 %1989
      %v1991 = vsel %vm326, %v1984, %v1986
      %v1992 = vsel %vm326, %v1988, %v1990
      %v1995 = vadd.f32 %v1951, %v1991
      %v1996 = vadd.f32 %v1952, %v1992
      %v1997 = vlaneseq
      %v1998 = vshrl.u32 %v1997, 7
      %v1999 = vsub.s32 6, %v1998
      %v2000 = vrot.slane %v230, %v1999
      %2002 = vrot.lane.b32.xlu0 %v2000, 32
      %v2003 = vpop.permute.xlu0 %2002
      %v2005 = vmul.f32 %v219, %v2003
      %v2006 = vmul.f32 %v220, %v2003
      %v2007 = vmul.f32 %v221, %v2003
      %v2008 = vmul.f32 %v222, %v2003
      %v2009 = vmul.f32 %v223, %v2003
      %v2010 = vmul.f32 %v224, %v2003
      %v2017 = vrot.slane %v2005, 6
      %v2018 = vrot.slane %v2007, 6
      %v2019 = vsel %vm1855, %v2017, %v2018
      %v2020 = vrot.slane %v2006, 6
      %v2021 = vrot.slane %v2008, 6
      %v2022 = vsel %vm1855, %v2020, %v2021
      %v2023 = vrot.slane %v2009, 6
      %v2024 = vsel %vm1855, %v2018, %v2023
      %v2025 = vrot.slane %v2010, 6
      %v2026 = vsel %vm1855, %v2021, %v2025
      %2027 = vrot.lane.b32.xlu0 %v2019, 96
      %v2028 = vpop.permute.xlu0 %2027
      %2029 = vrot.lane.b32.xlu0 %v2022, 96
      %v2030 = vpop.permute.xlu0 %2029
      %2031 = vrot.lane.b32.xlu0 %v2024, 96
      %v2032 = vpop.permute.xlu0 %2031
      %2033 = vrot.lane.b32.xlu0 %v2026, 96
      %v2034 = vpop.permute.xlu0 %2033
      %v2035 = vsel %vm357, %v2028, %v2030
      %v2036 = vsel %vm357, %v2032, %v2034
      %v2039 = vadd.f32 %v1995, %v2035
      %v2040 = vadd.f32 %v1996, %v2036
      %v2041 = vlaneseq
      %v2042 = vshrl.u32 %v2041, 7
      %v2043 = vsub.s32 7, %v2042
      %v2044 = vrot.slane %v230, %v2043
      %2046 = vrot.lane.b32.xlu0 %v2044, 40
      %v2047 = vpop.permute.xlu0 %2046
      %v2049 = vmul.f32 %v219, %v2047
      %v2050 = vmul.f32 %v220, %v2047
      %v2051 = vmul.f32 %v221, %v2047
      %v2052 = vmul.f32 %v222, %v2047
      %v2053 = vmul.f32 %v223, %v2047
      %v2054 = vmul.f32 %v224, %v2047
      %v2061 = vrot.slane %v2049, 6
      %v2062 = vrot.slane %v2051, 6
      %v2063 = vsel %vm1855, %v2061, %v2062
      %v2064 = vrot.slane %v2050, 6
      %v2065 = vrot.slane %v2052, 6
      %v2066 = vsel %vm1855, %v2064, %v2065
      %v2067 = vrot.slane %v2053, 6
      %v2068 = vsel %vm1855, %v2062, %v2067
      %v2069 = vrot.slane %v2054, 6
      %v2070 = vsel %vm1855, %v2065, %v2069
      %2071 = vrot.lane.b32.xlu0 %v2063, 88
      %v2072 = vpop.permute.xlu0 %2071
      %2073 = vrot.lane.b32.xlu0 %v2066, 88
      %v2074 = vpop.permute.xlu0 %2073
      %2075 = vrot.lane.b32.xlu0 %v2068, 88
      %v2076 = vpop.permute.xlu0 %2075
      %2077 = vrot.lane.b32.xlu0 %v2070, 88
      %v2078 = vpop.permute.xlu0 %2077
      %v2079 = vsel %vm388, %v2072, %v2074
      %v2080 = vsel %vm388, %v2076, %v2078
      %v2083 = vadd.f32 %v2039, %v2079
      %v2084 = vadd.f32 %v2040, %v2080
      %v2085 = vlaneseq
      %v2086 = vshrl.u32 %v2085, 7
      %v2087 = vsub.s32 0, %v2086
      %v2088 = vrot.slane %v231, %v2087
      %2090 = vrot.lane.b32.xlu0 %v2088, 48
      %v2091 = vpop.permute.xlu0 %2090
      %v2093 = vmul.f32 %v219, %v2091
      %v2094 = vmul.f32 %v220, %v2091
      %v2095 = vmul.f32 %v221, %v2091
      %v2096 = vmul.f32 %v222, %v2091
      %v2097 = vmul.f32 %v223, %v2091
      %v2098 = vmul.f32 %v224, %v2091
      %v2105 = vrot.slane %v2093, 6
      %v2106 = vrot.slane %v2095, 6
      %v2107 = vsel %vm1855, %v2105, %v2106
      %v2108 = vrot.slane %v2094, 6
      %v2109 = vrot.slane %v2096, 6
      %v2110 = vsel %vm1855, %v2108, %v2109
      %v2111 = vrot.slane %v2097, 6
      %v2112 = vsel %vm1855, %v2106, %v2111
      %v2113 = vrot.slane %v2098, 6
      %v2114 = vsel %vm1855, %v2109, %v2113
      %2115 = vrot.lane.b32.xlu0 %v2107, 80
      %v2116 = vpop.permute.xlu0 %2115
      %2117 = vrot.lane.b32.xlu0 %v2110, 80
      %v2118 = vpop.permute.xlu0 %2117
      %2119 = vrot.lane.b32.xlu0 %v2112, 80
      %v2120 = vpop.permute.xlu0 %2119
      %2121 = vrot.lane.b32.xlu0 %v2114, 80
      %v2122 = vpop.permute.xlu0 %2121
      %v2123 = vsel %vm419, %v2116, %v2118
      %v2124 = vsel %vm419, %v2120, %v2122
      %v2127 = vadd.f32 %v2083, %v2123
      %v2128 = vadd.f32 %v2084, %v2124
      %2129 = vst [vmem:[%s177] sm:$0xff] %v2127
      %2130 = vst [vmem:[%s177 + $0x8] sm:$0xff] %v2128
      %v2131 = vadd.f32 %v2127, %v2128
      %v2132 = vrot.slane %v2131, 4
      %v2133 = vadd.f32 %v2131, %v2132
      %v2134 = vrot.slane %v2133, 2
      %v2135 = vadd.f32 %v2133, %v2134
      %v2136 = vrot.slane %v2135, 1
      %v2137 = vadd.f32 %v2135, %v2136
      %v2138 = vmul.f32 %v2127, %v2127
      %v2139 = vmul.f32 %v2128, %v2128
      %v2140 = vadd.f32 %v2138, %v2139
      %v2141 = vrot.slane %v2140, 4
      %v2142 = vadd.f32 %v2140, %v2141
      %v2143 = vrot.slane %v2142, 2
      %v2144 = vadd.f32 %v2142, %v2143
      %v2145 = vrot.slane %v2144, 1
      %v2146 = vadd.f32 %v2144, %v2145
      %vm2147 = vcmask 1040384
      %v2148 = vsel %vm2147, %v2137, %v2146
      %2149 = vst [vmem:[%s181] sm:$0x3] %v2148
      %p2150 = scmp.lt.s32.totalorder %s15, 1
      %s2151 = scalar_select %p2150, %s15, 1
      %s2152 = smul.addr %s2151, 2
      %s2153 = smul.addr %s2152, 8
      %s2154 = scalar_lea.vmem %s2, %s2153
      %p2155 = scmp.lt.s32.totalorder %s15, 1
      %s2156 = scalar_select %p2155, %s15, 1
      %s2157 = smul.addr %s2156, 2
      %s2158 = scalar_lea.vmem %s3, %s2157
      // Predicated region
      $region29: #{global_mixer.1} parent=27 // pred_check
        %p2159 = pneg %p80
      $region30: #{global_mixer.1} parent=27 // pred_check_branch
        %2161 = sbr.rel (%p2159) target = $region32
      $region31: #{global_mixer.1} parent=27 // pred_region
        _
      $region32: #{global_mixer.1} parent=27 // pred_fallthru
        _
      // Predicated region
      $region33: #{global_mixer.1} parent=27 // pred_check
        %p2162 = pneg %p106
      $region34: #{global_mixer.1} parent=27 // pred_check_branch
        %2164 = sbr.rel (%p2162) target = $region36
      $region35: #{global_mixer.1} parent=27 // pred_region
        _
      $region36: #{global_mixer.1} parent=27 // pred_fallthru
        _
    $region28: #{global_mixer.1} parent=5 // pred_fallthru
      _
    %p2165 = scmp.le.s32.totalorder 2, %s10
    // Predicated region
    $region37: #{global_mixer.1} parent=5 // pred_check
      %p2166 = pneg %p2165
    $region38: #{global_mixer.1} parent=5 // pred_check_branch
      %2168 = sbr.rel (%p2166) target = $region40
    $region39: #{global_mixer.1} parent=5 // pred_region
      %s2169 = ssub.s32 %s10, 2
      // Predicated region
      $region41: #{global_mixer.1} parent=39 // pred_check
        %p2170 = pneg %p86
      $region42: #{global_mixer.1} parent=39 // pred_check_branch
        %2172 = sbr.rel (%p2170) target = $region44
      $region43: #{global_mixer.1} parent=39 // pred_region
        %p2173 = scmp.lt.s32.totalorder %s16, 1
        %s2174 = scalar_select %p2173, %s16, 1
        %s2175 = smul.addr %s2174, 2
        %s2176 = smul.addr %s2175, 8
        %s2177 = scalar_lea.vmem %s2, %s2176
      $region44: #{global_mixer.1} parent=39 // pred_fallthru
        _
      // Predicated region
      $region45: #{global_mixer.1} parent=39 // pred_check
        %p2178 = pneg %p112
      $region46: #{global_mixer.1} parent=39 // pred_check_branch
        %2180 = sbr.rel (%p2178) target = $region48
      $region47: #{global_mixer.1} parent=39 // pred_region
        %p2181 = scmp.lt.s32.totalorder %s16, 1
        %s2182 = scalar_select %p2181, %s16, 1
        %s2183 = smul.addr %s2182, 2
        %s2184 = scalar_lea.vmem %s3, %s2183
      $region48: #{global_mixer.1} parent=39 // pred_fallthru
        _
    $region40: #{global_mixer.1} parent=5 // pred_fallthru
      _
  $region6: #{global_mixer.1} parent=0 // loop_footer
    %s14 = sadd.s32 1, %s10
  $region7: #{global_mixer.1} parent=0 // loop_footer_branch
    %9 = sbr.rel target = $region3
  $region8: #{global_mixer.1} parent=0 // loop_exit
    _

</llo_original>
